<compile_context>
chip_gen: v7x
topology: tpu7x:2x2x1
jax: 0.10.0
libtpu: 0.0.40
codegen_flags: <defaults>
</compile_context>

<pallas_src>
import functools

import jax
import jax.numpy as jnp
from jax import lax
from jax.experimental import pallas as pl
from jax.experimental.pallas import tpu as pltpu

PATCH = 8            # RAFT works at 1/8 resolution
FLOW_PAD = 128       # lane-dense slab width for the (.., 2) flow state


def _round_up(x, m):
    return ((x + m - 1) // m) * m


@functools.lru_cache(maxsize=None)
def _vmem_limit_bytes():
    cap = 64 * 1024 * 1024
    try:
        cap = int(pltpu.get_tpu_info().vmem_capacity_bytes)
    except Exception:
        pass
    # ~5/8 of physical: ~80 MiB on v5e/v6e (128 MiB), 40 MiB on v7x (64 MiB).
    return max(32 * 1024 * 1024, min(int(cap * 5 // 8), 100 * 1024 * 1024))


def _cp(sem):
    return pltpu.CompilerParams(dimension_semantics=sem,
                                vmem_limit_bytes=_vmem_limit_bytes())


def _tile_rows(m, cap=512):
    """Pick an M-tile (multiple of 8, <= cap) minimizing row padding."""
    mp8 = _round_up(m, 8)
    if mp8 <= cap:
        return mp8, mp8
    best_tm, best_mp = None, None
    for tm in (512, 384, 256, 128):
        if tm > cap:
            continue
        mp = _round_up(mp8, tm)
        if best_mp is None or mp < best_mp:
            best_tm, best_mp = tm, mp
    return best_tm, best_mp


def _pad_rows(x, mp):
    m = x.shape[0]
    if mp == m:
        return x
    return jnp.pad(x, ((0, mp - m), (0, 0)))


# --------------------------------------------------------------------------
# Kernel 1: fused encoder  — one (TM, pdim) @ (pdim, fdim+idim+hdim) matmul.
# Columns ordered [fnet (relu) | cnet_inp (relu) | cnet_net (tanh)] so the
# tanh is applied only to its own slice.
# --------------------------------------------------------------------------
def _encoder_kernel(x_ref, w_ref, b_ref, o_ref, *, n_relu):
    y = (jnp.dot(x_ref[...], w_ref[...], preferred_element_type=jnp.float32)
         + b_ref[...])
    o_ref[:, :n_relu] = jnp.maximum(y[:, :n_relu], 0.0)
    o_ref[:, n_relu:] = jnp.tanh(y[:, n_relu:])


def encoder(p, w, b, n_relu):
    m, k = p.shape
    _, n = w.shape
    tm, mp = _tile_rows(m, cap=512)
    pp = _pad_rows(p, mp).astype(jnp.bfloat16)
    out = pl.pallas_call(
        functools.partial(_encoder_kernel, n_relu=n_relu),
        out_shape=jax.ShapeDtypeStruct((mp, n), jnp.float32),
        grid=(mp // tm,),
        in_specs=[
            pl.BlockSpec((tm, k), lambda i: (i, 0)),
            pl.BlockSpec((k, n), lambda i: (0, 0)),
            pl.BlockSpec((1, n), lambda i: (0, 0)),
        ],
        out_specs=pl.BlockSpec((tm, n), lambda i: (i, 0)),
        compiler_params=_cp(("parallel",)),
    )(pp, w.astype(jnp.bfloat16), b.reshape(1, n).astype(jnp.float32))
    return out[:m]


# --------------------------------------------------------------------------
# Kernel 2: hoisted constant gate term  c_gates = corr @ Wc + inp @ Wi + b
# (corr and inp passed separately — no x_const concat / HBM round trip)
# --------------------------------------------------------------------------
def _gate_linear_kernel(corr_ref, inp_ref, wc_ref, wi_ref, b_ref, o_ref):
    o_ref[...] = (jnp.dot(corr_ref[...], wc_ref[...],
                          preferred_element_type=jnp.float32)
                  + jnp.dot(inp_ref[...], wi_ref[...],
                            preferred_element_type=jnp.float32)
                  + b_ref[...])


def gate_linear(corr, inp, wc, wi, b):
    m, kc = corr.shape
    _, ki = inp.shape
    n = wc.shape[1]
    tm, mp = _tile_rows(m, cap=512)
    corr_p = _pad_rows(corr, mp)
    inp_p = _pad_rows(inp, mp)
    out = pl.pallas_call(
        _gate_linear_kernel,
        out_shape=jax.ShapeDtypeStruct((mp, n), jnp.float32),
        grid=(mp // tm,),
        in_specs=[
            pl.BlockSpec((tm, kc), lambda i: (i, 0)),
            pl.BlockSpec((tm, ki), lambda i: (i, 0)),
            pl.BlockSpec((kc, n), lambda i: (0, 0)),
            pl.BlockSpec((ki, n), lambda i: (0, 0)),
            pl.BlockSpec((1, n), lambda i: (0, 0)),
        ],
        out_specs=pl.BlockSpec((tm, n), lambda i: (i, 0)),
        compiler_params=_cp(("parallel",)),
    )(corr_p, inp_p, wc.astype(jnp.bfloat16), wi.astype(jnp.bfloat16),
      b.reshape(1, n).astype(jnp.float32))
    return out[:m]


# --------------------------------------------------------------------------
# Kernel 3: all-pairs correlation, BOTH directions, tiled over (dir, B, P, P)
#   fwd[b, i, j] = <f1[b,i,:], f2[b,j,:]> / sqrt(D)   -> output batch b
#   bwd[b, i, j] = <f2[b,i,:], f1[b,j,:]> / sqrt(D)   -> output batch L+b
# The backward blocks are produced by swapping the dot operands (the input
# index_maps swap i/j when dir==1), so no XLA transpose / concat is needed.
# --------------------------------------------------------------------------
def _corr_kernel(f1_ref, f2_ref, o_ref, *, scale):
    d = pl.program_id(0)
    dims = (((1,), (1,)), ((), ()))

    @pl.when(d == 0)
    def _():
        c = lax.dot_general(f1_ref[0], f2_ref[0], dims,
                            preferred_element_type=jnp.float32)
        o_ref[0] = (c * scale).astype(o_ref.dtype)

    @pl.when(d == 1)
    def _():
        c = lax.dot_general(f2_ref[0], f1_ref[0], dims,
                            preferred_element_type=jnp.float32)
        o_ref[0] = (c * scale).astype(o_ref.dtype)


def correlation(f1, f2):
    nb, p, dfeat = f1.shape
    scale = float(1.0 / (dfeat ** 0.5))
    if p <= 128:
        ti, pp = p, p
    else:
        ti = 128
        pp = _round_up(p, ti)
        if pp != p:
            pad = ((0, 0), (0, pp - p), (0, 0))
            f1 = jnp.pad(f1, pad)
            f2 = jnp.pad(f2, pad)

    out = pl.pallas_call(
        functools.partial(_corr_kernel, scale=scale),
        out_shape=jax.ShapeDtypeStruct((2 * nb, pp, pp), jnp.bfloat16),
        grid=(2, nb, pp // ti, pp // ti),
        in_specs=[
            pl.BlockSpec((1, ti, dfeat),
                         lambda dd, bb, i, j: (bb, i * (1 - dd) + j * dd, 0)),
            pl.BlockSpec((1, ti, dfeat),
                         lambda dd, bb, i, j: (bb, j * (1 - dd) + i * dd, 0)),
        ],
        out_specs=pl.BlockSpec((1, ti, ti),
                               lambda dd, bb, i, j: (dd * nb + bb, i, j)),
        compiler_params=_cp(("parallel", "parallel", "parallel", "parallel")),
    )(f1.astype(jnp.bfloat16), f2.astype(jnp.bfloat16))

    if pp != p:
        # TODO(synk): this slice is an extra copy; keep P a multiple of 128
        # at real resolutions to avoid it.
        out = out[:, :p, :p]
    return out


# --------------------------------------------------------------------------
# Kernel 4: on-chip GRU refinement — all `iters` iterations in one call.
#   z|r = sigma(h [Wzh|Wrh] + u*wf_u + v*wf_v + c_zr)   (c_* hoisted)
#   q   = tanh((r*h) Wqh     + u*wf_u' + v*wf_v' + c_q)
#   h <- (1-z) h + z q ;  flow <- flow + head2(relu(head1(h)))
# flow is kept in a lane-dense (TM, 128) slab (cols 0..1 real, rest zero);
# its gate contribution is two rank-1 VPU updates (no zero-padded matmul).
# Weights / biases / c slices are read from VMEM refs at use sites to keep
# loop-carried vreg pressure low.
# --------------------------------------------------------------------------
def _gru_refine_kernel(h0_ref, c_ref, whzr_ref, whq_ref, wf_ref,
                       h1w_ref, h1b_ref, h2w_ref, h2b_ref, o_ref,
                       *, iters, hdim):
    tm = h0_ref.shape[0]
    h2 = 2 * hdim

    def body(_, carry):
        h, fl = carry
        # hidden-state gate matmul, fused [Wzh | Wrh]  -> (TM, 2H)
        a_h = jnp.dot(h.astype(jnp.bfloat16), whzr_ref[...],
                      preferred_element_type=jnp.float32)
        # flow gate contribution: rank-1 updates on the 2 real flow lanes
        a_f = (fl[:, 0:1] * wf_ref[0:1, :]
               + fl[:, 1:2] * wf_ref[1:2, :])                       # (TM, 3H)
        zr = jax.nn.sigmoid(a_h + a_f[:, :h2] + c_ref[:, :h2])      # (TM, 2H)
        z = zr[:, :hdim]
        r = zr[:, hdim:]
        aq = (jnp.dot((r * h).astype(jnp.bfloat16), whq_ref[...],
                      preferred_element_type=jnp.float32)
              + a_f[:, h2:] + c_ref[:, h2:])
        q = jnp.tanh(aq)
        h_new = (1.0 - z) * h + z * q
        dh = jnp.maximum(
            jnp.dot(h_new.astype(jnp.bfloat16), h1w_ref[...],
                    preferred_element_type=jnp.float32) + h1b_ref[...], 0.0)
        dflow = jnp.dot(dh.astype(jnp.bfloat16), h2w_ref[...],
                        preferred_element_type=jnp.float32) + h2b_ref[...]
        return h_new, fl + dflow

    fl0 = jnp.zeros((tm, FLOW_PAD), jnp.float32)
    _, fl_fin = lax.fori_loop(0, iters, body, (h0_ref[...], fl0))
    o_ref[...] = fl_fin


def gru_refine(h0, c_gates, params, iters):
    m, hdim = h0.shape
    tm, mp = _tile_rows(m, cap=256)
    h0p = _pad_rows(h0, mp)
    cgp = _pad_rows(c_gates, mp)
    out = pl.pallas_call(
        functools.partial(_gru_refine_kernel, iters=iters, hdim=hdim),
        out_shape=jax.ShapeDtypeStruct((mp, FLOW_PAD), jnp.float32),
        grid=(mp // tm,),
        in_specs=[
            pl.BlockSpec((tm, hdim), lambda i: (i, 0)),
            pl.BlockSpec((tm, 3 * hdim), lambda i: (i, 0)),
            pl.BlockSpec((hdim, 2 * hdim), lambda i: (0, 0)),
            pl.BlockSpec((hdim, hdim), lambda i: (0, 0)),
            pl.BlockSpec((2, 3 * hdim), lambda i: (0, 0)),
            pl.BlockSpec((hdim, hdim), lambda i: (0, 0)),
            pl.BlockSpec((1, hdim), lambda i: (0, 0)),
            pl.BlockSpec((hdim, FLOW_PAD), lambda i: (0, 0)),
            pl.BlockSpec((1, FLOW_PAD), lambda i: (0, 0)),
        ],
        out_specs=pl.BlockSpec((tm, FLOW_PAD), lambda i: (i, 0)),
        compiler_params=_cp(("parallel",)),
    )(h0p, cgp,
      params["w_hzr"].astype(jnp.bfloat16),
      params["w_hq"].astype(jnp.bfloat16),
      params["w_xf"].astype(jnp.float32),
      params["head1_w"].astype(jnp.bfloat16),
      params["head1_b"].reshape(1, hdim).astype(jnp.float32),
      params["head2_w_pad"].astype(jnp.bfloat16),
      params["head2_b_pad"].reshape(1, FLOW_PAD).astype(jnp.float32))
    return out[:m, :2]


# --------------------------------------------------------------------------
# Glue: 8x8 stride-8 patch extraction (the 1/8-resolution feature grid)
# --------------------------------------------------------------------------
def _patchify(img):
    l, c, h, w = img.shape
    hs, ws = h // PATCH, w // PATCH
    x = img.reshape(l, c, hs, PATCH, ws, PATCH)
    x = jnp.transpose(x, (0, 2, 4, 1, 3, 5))          # (L, Hs, Ws, C, ph, pw)
    return x.reshape(l * hs * ws, c * PATCH * PATCH), hs, ws


# --------------------------------------------------------------------------
# RAFT_bi.forward: bidirectional flow, both directions batched along M.
# --------------------------------------------------------------------------
def raft_bi_forward(params, src_frames, tgt_frames, iters=20):
    assert src_frames.shape == tgt_frames.shape, "Input frames must have the same size"
    l, c, h, w = src_frames.shape

    img_s = 2.0 * (src_frames / 255.0) - 1.0
    img_t = 2.0 * (tgt_frames / 255.0) - 1.0
    p_s, hs, ws = _patchify(img_s)
    p_t, _, _ = _patchify(img_t)
    pgrid = hs * ws
    n_src = l * pgrid

    hdim = params["w_hq"].shape[0]
    idim = params["w_xi"].shape[0]
    fdim = params["w_enc"].shape[1] - hdim - idim

    # shared encoders run ONCE on [src | tgt] (fnet + cnet fused)
    p_all = jnp.concatenate([p_s, p_t], axis=0)                   # (2*L*P, pdim)
    enc = encoder(p_all, params["w_enc"], params["b_enc"], n_relu=fdim + idim)
    fmap = enc[:, :fdim]
    inp_all = enc[:, fdim:fdim + idim]                            # context input (relu)
    net_all = enc[:, fdim + idim:]                                # context hidden (tanh)

    fmap_s = fmap[:n_src].reshape(l, pgrid, fdim)
    fmap_t = fmap[n_src:].reshape(l, pgrid, fdim)

    # forward + backward correlation from ONE kernel (bwd via operand swap)
    corr = correlation(fmap_s, fmap_t)                            # (2L, P, P) bf16
    corr_all = corr.reshape(2 * n_src, pgrid)
    # TODO(synk): real RAFT samples a 4-level correlation pyramid with bilinear
    # lookup at coords+flow (radius 4); here the full level-0 row is used.

    # hoisted constant gate contributions of corr and inp (flow part in-loop)
    c_gates = gate_linear(corr_all, inp_all.astype(jnp.bfloat16),
                          params["w_xc"], params["w_xi"], params["b_gates"])

    # on-chip iterative refinement, both directions batched
    flow = gru_refine(net_all, c_gates, params, iters)            # (2*L*P, 2)

    # upsample 1/8-resolution flow to full resolution (values scaled by 8).
    # TODO(synk): real RAFT uses learned convex (mask-weighted 3x3) upsampling.
    def upsample(f8):
        return 8.0 * jnp.repeat(jnp.repeat(f8, PATCH, axis=1), PATCH, axis=2)

    gt_flows_forward = upsample(flow[:n_src].reshape(l, hs, ws, 2))
    gt_flows_backward = upsample(flow[n_src:].reshape(l, hs, ws, 2))
    return gt_flows_forward, gt_flows_backward                    # (L, H, W, 2) each


# --------------------------------------------------------------------------
# Deterministic synthetic parameters (checkpoint cannot be loaded)
# --------------------------------------------------------------------------
def init_params(key, c=3, h=16, w=16, fdim=64, hdim=64, idim=64):
    pgrid = (h // PATCH) * (w // PATCH)
    pdim = c * PATCH * PATCH
    ks = jax.random.split(key, 9)

    def nrm(k, shape, scale=0.05):
        return scale * jax.random.normal(k, shape, jnp.float32)

    zeros = lambda *s: jnp.zeros(s, jnp.float32)

    head2_w = nrm(ks[6], (hdim, 2), 0.01)

    return {
        # fused encoder columns: [fnet (relu) | cnet_inp (relu) | cnet_net (tanh)]
        "w_enc": nrm(ks[0], (pdim, fdim + idim + hdim)),
        "b_enc": zeros(fdim + idim + hdim),
        # constant gate path split along K: corr part and inp part, cols [z|r|q]
        "w_xc": nrm(ks[1], (pgrid, 3 * hdim)),
        "w_xi": nrm(ks[2], (idim, 3 * hdim)),
        "b_gates": zeros(3 * hdim),
        # flow gate path: only the 2 real flow rows (u, v) — rank-1 in-kernel
        "w_xf": nrm(ks[3], (2, 3 * hdim)),
        # hidden gate path: fused [Wzh | Wrh], separate Wqh (acts on r*h)
        "w_hzr": nrm(ks[4], (hdim, 2 * hdim)),
        "w_hq": nrm(ks[5], (hdim, hdim)),
        # flow head (fused into the GRU kernel), head2 padded lane-dense
        "head1_w": nrm(ks[7], (hdim, hdim)),
        "head1_b": zeros(hdim),
        "head2_w_pad": jnp.pad(head2_w, ((0, 0), (0, FLOW_PAD - 2))),
        "head2_b_pad": zeros(FLOW_PAD),
    }


if __name__ == "__main__":
    key = jax.random.PRNGKey(0)
    k_src, k_tgt, k_par = jax.random.split(key, 3)

    L, C, H, W = 2, 3, 16, 16           # small frame stack: (l, c, h, w)
    src_frames = jax.random.uniform(k_src, (L, C, H, W), jnp.float32) * 255.0
    tgt_frames = jax.random.uniform(k_tgt, (L, C, H, W), jnp.float32) * 255.0

    params = init_params(k_par, c=C, h=H, w=W)

    fwd = jax.jit(functools.partial(raft_bi_forward, iters=20))
    gt_flows_forward, gt_flows_backward = fwd(params, src_frames, tgt_frames)
    jax.block_until_ready((gt_flows_forward, gt_flows_backward))

    assert gt_flows_forward.shape == (L, H, W, 2)
    assert gt_flows_backward.shape == (L, H, W, 2)
    assert gt_flows_forward.dtype == jnp.float32
    assert bool(jnp.all(jnp.isfinite(gt_flows_forward)))
    assert bool(jnp.all(jnp.isfinite(gt_flows_backward)))

    print("KERNEL_OK")
</pallas_src>

<mosaic_0001>
module attributes {stable_mosaic.version = 11 : i64} {
  func.func @_encoder_kernel(%arg0: i32, %arg1: memref<16x192xbf16, #tpu.memory_space<vmem>>, %arg2: memref<192x192xbf16, #tpu.memory_space<vmem>>, %arg3: memref<1x192xf32, #tpu.memory_space<vmem>>, %arg4: memref<16x192xf32, #tpu.memory_space<vmem>>) attributes {dimension_semantics = [#tpu.dimension_semantics<parallel>], iteration_bounds = array<i64: 1>, scalar_prefetch = 0 : i64, scratch_operands = 0 : i64, tpu.core_type = #tpu.core_type<tc>, window_params = [{transform_indices = @transform_0, window_bounds = array<i64: 16, 192>}, {pipeline_mode = #tpu.pipeline_mode<synchronous>, transform_indices = @transform_1, window_bounds = array<i64: 192, 192>}, {pipeline_mode = #tpu.pipeline_mode<synchronous>, transform_indices = @transform_2, window_bounds = array<i64: 1, 192>}, {transform_indices = @transform_3, window_bounds = array<i64: 16, 192>}]} {
    %c0 = arith.constant 0 : index
    %c0_0 = arith.constant 0 : index
    %0 = vector.load %arg1[%c0, %c0_0] : memref<16x192xbf16, #tpu.memory_space<vmem>>, vector<16x192xbf16>
    %c0_1 = arith.constant 0 : index
    %c0_2 = arith.constant 0 : index
    %1 = vector.load %arg2[%c0_1, %c0_2] : memref<192x192xbf16, #tpu.memory_space<vmem>>, vector<192x192xbf16>
    %cst = arith.constant dense<0.000000e+00> : vector<16x192xf32>
    %2 = tpu.matmul %0, %1, %cst {dimension_numbers = #tpu.dot_dimension_numbers<[1], [0], [0], [1], [0, 0, 1, 1], [], []>} : vector<16x192xbf16>, vector<192x192xbf16>, vector<16x192xf32> -> vector<16x192xf32>
    %c0_3 = arith.constant 0 : index
    %c0_4 = arith.constant 0 : index
    %3 = vector.load %arg3[%c0_3, %c0_4] : memref<1x192xf32, #tpu.memory_space<vmem>>, vector<1x192xf32>
    %4 = vector.broadcast %3 : vector<1x192xf32> to vector<16x192xf32>
    %5 = arith.addf %2, %4 : vector<16x192xf32>
    %6 = vector.extract_strided_slice %5 {offsets = [0, 0], sizes = [16, 128], strides = [1, 1]} : vector<16x192xf32> to vector<16x128xf32>
    %cst_5 = arith.constant 0.000000e+00 : f32
    %7 = vector.broadcast %cst_5 : f32 to vector<16x128xf32>
    %8 = arith.maximumf %6, %7 : vector<16x128xf32>
    %c0_6 = arith.constant 0 : index
    %c0_7 = arith.constant 0 : index
    %9 = vector.load %arg4[%c0_6, %c0_7] : memref<16x192xf32, #tpu.memory_space<vmem>>, vector<16x128xf32>
    tpu.vector_store %arg4[%c0_6, %c0_7], %8 {strides = array<i32>} : memref<16x192xf32, #tpu.memory_space<vmem>>, vector<16x128xf32>,
    %10 = vector.extract_strided_slice %5 {offsets = [0, 128], sizes = [16, 64], strides = [1, 1]} : vector<16x192xf32> to vector<16x64xf32>
    %11 = math.tanh %10 : vector<16x64xf32>
    %c0_8 = arith.constant 0 : index
    %c128 = arith.constant 128 : index
    %12 = vector.load %arg4[%c0_8, %c128] : memref<16x192xf32, #tpu.memory_space<vmem>>, vector<16x64xf32>
    tpu.vector_store %arg4[%c0_8, %c128], %11 {strides = array<i32>} : memref<16x192xf32, #tpu.memory_space<vmem>>, vector<16x64xf32>,
    return
  }
  func.func @transform_0(%arg0: i32) -> (i32, i32) {
    %c0_i32 = arith.constant 0 : i32
    %c0_i32_0 = arith.constant 0 : i32
    return %arg0, %c0_i32 : i32, i32
  }
  func.func @transform_1(%arg0: i32) -> (i32, i32) {
    %c0_i32 = arith.constant 0 : i32
    %c0_i32_0 = arith.constant 0 : i32
    %c0_i32_1 = arith.constant 0 : i32
    return %c0_i32, %c0_i32_0 : i32, i32
  }
  func.func @transform_2(%arg0: i32) -> (i32, i32) {
    %c0_i32 = arith.constant 0 : i32
    %c0_i32_0 = arith.constant 0 : i32
    %c0_i32_1 = arith.constant 0 : i32
    return %c0_i32, %c0_i32_0 : i32, i32
  }
  func.func @transform_3(%arg0: i32) -> (i32, i32) {
    %c0_i32 = arith.constant 0 : i32
    %c0_i32_0 = arith.constant 0 : i32
    return %arg0, %c0_i32 : i32, i32
  }
}

module attributes {stable_mosaic.version = 11 : i64} {
  func.func @_corr_kernel(%arg0: i32, %arg1: i32, %arg2: i32, %arg3: i32, %arg4: memref<1x4x64xbf16, #tpu.memory_space<vmem>>, %arg5: memref<1x4x64xbf16, #tpu.memory_space<vmem>>, %arg6: memref<1x4x4xbf16, #tpu.memory_space<vmem>>) attributes {dimension_semantics = [#tpu.dimension_semantics<parallel>, #tpu.dimension_semantics<parallel>, #tpu.dimension_semantics<parallel>, #tpu.dimension_semantics<parallel>], iteration_bounds = array<i64: 2, 2, 1, 1>, scalar_prefetch = 0 : i64, scratch_operands = 0 : i64, tpu.core_type = #tpu.core_type<tc>, window_params = [{transform_indices = @transform_0, window_bounds = array<i64: 1, 4, 64>}, {transform_indices = @transform_1, window_bounds = array<i64: 1, 4, 64>}, {transform_indices = @transform_2, window_bounds = array<i64: 1, 4, 4>}]} {
    %c0_i32 = arith.constant 0 : i32
    %0 = arith.cmpi eq, %arg0, %c0_i32 : i32
    %1 = arith.extui %0 : i1 to i32
    %c0_i32_0 = arith.constant 0 : i32
    %2 = arith.cmpi ne, %1, %c0_i32_0 : i32
    scf.if %2 {
      %c0 = arith.constant 0 : index
      %c0_2 = arith.constant 0 : index
      %c0_3 = arith.constant 0 : index
      %6 = vector.load %arg4[%c0, %c0_2, %c0_3] : memref<1x4x64xbf16, #tpu.memory_space<vmem>>, vector<1x4x64xbf16>
      %7 = vector.shape_cast %6 : vector<1x4x64xbf16> to vector<4x64xbf16>
      %c0_4 = arith.constant 0 : index
      %c0_5 = arith.constant 0 : index
      %c0_6 = arith.constant 0 : index
      %8 = vector.load %arg5[%c0_4, %c0_5, %c0_6] : memref<1x4x64xbf16, #tpu.memory_space<vmem>>, vector<1x4x64xbf16>
      %9 = vector.shape_cast %8 : vector<1x4x64xbf16> to vector<4x64xbf16>
      %cst = arith.constant dense<0.000000e+00> : vector<4x4xf32>
      %10 = tpu.matmul %7, %9, %cst {dimension_numbers = #tpu.dot_dimension_numbers<[1], [1], [0], [0], [0, 0, 1, 0], [], []>} : vector<4x64xbf16>, vector<4x64xbf16>, vector<4x4xf32> -> vector<4x4xf32>
      %cst_7 = arith.constant 1.250000e-01 : f32
      %11 = vector.broadcast %cst_7 : f32 to vector<4x4xf32>
      %12 = arith.mulf %10, %11 : vector<4x4xf32>
      %13 = arith.truncf %12 : vector<4x4xf32> to vector<4x4xbf16>
      %c0_8 = arith.constant 0 : index
      %c0_9 = arith.constant 0 : index
      %c0_10 = arith.constant 0 : index
      %14 = vector.load %arg6[%c0_8, %c0_9, %c0_10] : memref<1x4x4xbf16, #tpu.memory_space<vmem>>, vector<1x4x4xbf16>
      %15 = vector.shape_cast %14 : vector<1x4x4xbf16> to vector<4x4xbf16>
      %16 = vector.shape_cast %13 : vector<4x4xbf16> to vector<1x4x4xbf16>
      tpu.vector_store %arg6[%c0_8, %c0_9, %c0_10], %16 {strides = array<i32>} : memref<1x4x4xbf16, #tpu.memory_space<vmem>>, vector<1x4x4xbf16>,
    } else {
    }
    %c1_i32 = arith.constant 1 : i32
    %3 = arith.cmpi eq, %arg0, %c1_i32 : i32
    %4 = arith.extui %3 : i1 to i32
    %c0_i32_1 = arith.constant 0 : i32
    %5 = arith.cmpi ne, %4, %c0_i32_1 : i32
    scf.if %5 {
      %c0 = arith.constant 0 : index
      %c0_2 = arith.constant 0 : index
      %c0_3 = arith.constant 0 : index
      %6 = vector.load %arg5[%c0, %c0_2, %c0_3] : memref<1x4x64xbf16, #tpu.memory_space<vmem>>, vector<1x4x64xbf16>
      %7 = vector.shape_cast %6 : vector<1x4x64xbf16> to vector<4x64xbf16>
      %c0_4 = arith.constant 0 : index
      %c0_5 = arith.constant 0 : index
      %c0_6 = arith.constant 0 : index
      %8 = vector.load %arg4[%c0_4, %c0_5, %c0_6] : memref<1x4x64xbf16, #tpu.memory_space<vmem>>, vector<1x4x64xbf16>
      %9 = vector.shape_cast %8 : vector<1x4x64xbf16> to vector<4x64xbf16>
      %cst = arith.constant dense<0.000000e+00> : vector<4x4xf32>
      %10 = tpu.matmul %7, %9, %cst {dimension_numbers = #tpu.dot_dimension_numbers<[1], [1], [0], [0], [0, 0, 1, 0], [], []>} : vector<4x64xbf16>, vector<4x64xbf16>, vector<4x4xf32> -> vector<4x4xf32>
      %cst_7 = arith.constant 1.250000e-01 : f32
      %11 = vector.broadcast %cst_7 : f32 to vector<4x4xf32>
      %12 = arith.mulf %10, %11 : vector<4x4xf32>
      %13 = arith.truncf %12 : vector<4x4xf32> to vector<4x4xbf16>
      %c0_8 = arith.constant 0 : index
      %c0_9 = arith.constant 0 : index
      %c0_10 = arith.constant 0 : index
      %14 = vector.load %arg6[%c0_8, %c0_9, %c0_10] : memref<1x4x4xbf16, #tpu.memory_space<vmem>>, vector<1x4x4xbf16>
      %15 = vector.shape_cast %14 : vector<1x4x4xbf16> to vector<4x4xbf16>
      %16 = vector.shape_cast %13 : vector<4x4xbf16> to vector<1x4x4xbf16>
      tpu.vector_store %arg6[%c0_8, %c0_9, %c0_10], %16 {strides = array<i32>} : memref<1x4x4xbf16, #tpu.memory_space<vmem>>, vector<1x4x4xbf16>,
    } else {
    }
    return
  }
  func.func @transform_0(%arg0: i32, %arg1: i32, %arg2: i32, %arg3: i32) -> (i32, i32, i32) {
    %c1_i32 = arith.constant 1 : i32
    %0 = arith.subi %c1_i32, %arg0 : i32
    %1 = arith.muli %arg2, %0 : i32
    %2 = arith.muli %arg3, %arg0 : i32
    %3 = arith.addi %1, %2 : i32
    %c0_i32 = arith.constant 0 : i32
    %c0_i32_0 = arith.constant 0 : i32
    return %arg1, %3, %c0_i32 : i32, i32, i32
  }
  func.func @transform_1(%arg0: i32, %arg1: i32, %arg2: i32, %arg3: i32) -> (i32, i32, i32) {
    %c1_i32 = arith.constant 1 : i32
    %0 = arith.subi %c1_i32, %arg0 : i32
    %1 = arith.muli %arg3, %0 : i32
    %2 = arith.muli %arg2, %arg0 : i32
    %3 = arith.addi %1, %2 : i32
    %c0_i32 = arith.constant 0 : i32
    %c0_i32_0 = arith.constant 0 : i32
    return %arg1, %3, %c0_i32 : i32, i32, i32
  }
  func.func @transform_2(%arg0: i32, %arg1: i32, %arg2: i32, %arg3: i32) -> (i32, i32, i32) {
    %c2_i32 = arith.constant 2 : i32
    %0 = arith.muli %arg0, %c2_i32 : i32
    %1 = arith.addi %0, %arg1 : i32
    %c0_i32 = arith.constant 0 : i32
    return %1, %arg2, %arg3 : i32, i32, i32
  }
}

module attributes {stable_mosaic.version = 11 : i64} {
  func.func @_gate_linear_kernel(%arg0: i32, %arg1: memref<16x4xbf16, #tpu.memory_space<vmem>>, %arg2: memref<16x64xbf16, #tpu.memory_space<vmem>>, %arg3: memref<4x192xbf16, #tpu.memory_space<vmem>>, %arg4: memref<64x192xbf16, #tpu.memory_space<vmem>>, %arg5: memref<1x192xf32, #tpu.memory_space<vmem>>, %arg6: memref<16x192xf32, #tpu.memory_space<vmem>>) attributes {dimension_semantics = [#tpu.dimension_semantics<parallel>], iteration_bounds = array<i64: 1>, scalar_prefetch = 0 : i64, scratch_operands = 0 : i64, tpu.core_type = #tpu.core_type<tc>, window_params = [{transform_indices = @transform_0, window_bounds = array<i64: 16, 4>}, {transform_indices = @transform_1, window_bounds = array<i64: 16, 64>}, {pipeline_mode = #tpu.pipeline_mode<synchronous>, transform_indices = @transform_2, window_bounds = array<i64: 4, 192>}, {pipeline_mode = #tpu.pipeline_mode<synchronous>, transform_indices = @transform_3, window_bounds = array<i64: 64, 192>}, {pipeline_mode = #tpu.pipeline_mode<synchronous>, transform_indices = @transform_4, window_bounds = array<i64: 1, 192>}, {transform_indices = @transform_5, window_bounds = array<i64: 16, 192>}]} {
    %c0 = arith.constant 0 : index
    %c0_0 = arith.constant 0 : index
    %0 = vector.load %arg1[%c0, %c0_0] : memref<16x4xbf16, #tpu.memory_space<vmem>>, vector<16x4xbf16>
    %c0_1 = arith.constant 0 : index
    %c0_2 = arith.constant 0 : index
    %1 = vector.load %arg3[%c0_1, %c0_2] : memref<4x192xbf16, #tpu.memory_space<vmem>>, vector<4x192xbf16>
    %cst = arith.constant dense<0.000000e+00> : vector<16x192xf32>
    %2 = tpu.matmul %0, %1, %cst {dimension_numbers = #tpu.dot_dimension_numbers<[1], [0], [0], [1], [0, 0, 1, 1], [], []>} : vector<16x4xbf16>, vector<4x192xbf16>, vector<16x192xf32> -> vector<16x192xf32>
    %c0_3 = arith.constant 0 : index
    %c0_4 = arith.constant 0 : index
    %3 = vector.load %arg2[%c0_3, %c0_4] : memref<16x64xbf16, #tpu.memory_space<vmem>>, vector<16x64xbf16>
    %c0_5 = arith.constant 0 : index
    %c0_6 = arith.constant 0 : index
    %4 = vector.load %arg4[%c0_5, %c0_6] : memref<64x192xbf16, #tpu.memory_space<vmem>>, vector<64x192xbf16>
    %cst_7 = arith.constant dense<0.000000e+00> : vector<16x192xf32>
    %5 = tpu.matmul %3, %4, %cst_7 {dimension_numbers = #tpu.dot_dimension_numbers<[1], [0], [0], [1], [0, 0, 1, 1], [], []>} : vector<16x64xbf16>, vector<64x192xbf16>, vector<16x192xf32> -> vector<16x192xf32>
    %6 = arith.addf %2, %5 : vector<16x192xf32>
    %c0_8 = arith.constant 0 : index
    %c0_9 = arith.constant 0 : index
    %7 = vector.load %arg5[%c0_8, %c0_9] : memref<1x192xf32, #tpu.memory_space<vmem>>, vector<1x192xf32>
    %8 = vector.broadcast %7 : vector<1x192xf32> to vector<16x192xf32>
    %9 = arith.addf %6, %8 : vector<16x192xf32>
    %c0_10 = arith.constant 0 : index
    %c0_11 = arith.constant 0 : index
    %10 = vector.load %arg6[%c0_10, %c0_11] : memref<16x192xf32, #tpu.memory_space<vmem>>, vector<16x192xf32>
    tpu.vector_store %arg6[%c0_10, %c0_11], %9 {strides = array<i32>} : memref<16x192xf32, #tpu.memory_space<vmem>>, vector<16x192xf32>,
    return
  }
  func.func @transform_0(%arg0: i32) -> (i32, i32) {
    %c0_i32 = arith.constant 0 : i32
    %c0_i32_0 = arith.constant 0 : i32
    return %arg0, %c0_i32 : i32, i32
  }
  func.func @transform_1(%arg0: i32) -> (i32, i32) {
    %c0_i32 = arith.constant 0 : i32
    %c0_i32_0 = arith.constant 0 : i32
    return %arg0, %c0_i32 : i32, i32
  }
  func.func @transform_2(%arg0: i32) -> (i32, i32) {
    %c0_i32 = arith.constant 0 : i32
    %c0_i32_0 = arith.constant 0 : i32
    %c0_i32_1 = arith.constant 0 : i32
    return %c0_i32, %c0_i32_0 : i32, i32
  }
  func.func @transform_3(%arg0: i32) -> (i32, i32) {
    %c0_i32 = arith.constant 0 : i32
    %c0_i32_0 = arith.constant 0 : i32
    %c0_i32_1 = arith.constant 0 : i32
    return %c0_i32, %c0_i32_0 : i32, i32
  }
  func.func @transform_4(%arg0: i32) -> (i32, i32) {
    %c0_i32 = arith.constant 0 : i32
    %c0_i32_0 = arith.constant 0 : i32
    %c0_i32_1 = arith.constant 0 : i32
    return %c0_i32, %c0_i32_0 : i32, i32
  }
  func.func @transform_5(%arg0: i32) -> (i32, i32) {
    %c0_i32 = arith.constant 0 : i32
    %c0_i32_0 = arith.constant 0 : i32
    return %arg0, %c0_i32 : i32, i32
  }
}

module attributes {stable_mosaic.version = 11 : i64} {
  func.func @_gru_refine_kernel(%arg0: i32, %arg1: memref<16x64xf32, #tpu.memory_space<vmem>>, %arg2: memref<16x192xf32, #tpu.memory_space<vmem>>, %arg3: memref<64x128xbf16, #tpu.memory_space<vmem>>, %arg4: memref<64x64xbf16, #tpu.memory_space<vmem>>, %arg5: memref<2x192xf32, #tpu.memory_space<vmem>>, %arg6: memref<64x64xbf16, #tpu.memory_space<vmem>>, %arg7: memref<1x64xf32, #tpu.memory_space<vmem>>, %arg8: memref<64x128xbf16, #tpu.memory_space<vmem>>, %arg9: memref<1x128xf32, #tpu.memory_space<vmem>>, %arg10: memref<16x128xf32, #tpu.memory_space<vmem>>) attributes {dimension_semantics = [#tpu.dimension_semantics<parallel>], iteration_bounds = array<i64: 1>, scalar_prefetch = 0 : i64, scratch_operands = 0 : i64, tpu.core_type = #tpu.core_type<tc>, window_params = [{transform_indices = @transform_0, window_bounds = array<i64: 16, 64>}, {transform_indices = @transform_1, window_bounds = array<i64: 16, 192>}, {pipeline_mode = #tpu.pipeline_mode<synchronous>, transform_indices = @transform_2, window_bounds = array<i64: 64, 128>}, {pipeline_mode = #tpu.pipeline_mode<synchronous>, transform_indices = @transform_3, window_bounds = array<i64: 64, 64>}, {pipeline_mode = #tpu.pipeline_mode<synchronous>, transform_indices = @transform_4, window_bounds = array<i64: 2, 192>}, {pipeline_mode = #tpu.pipeline_mode<synchronous>, transform_indices = @transform_5, window_bounds = array<i64: 64, 64>}, {pipeline_mode = #tpu.pipeline_mode<synchronous>, transform_indices = @transform_6, window_bounds = array<i64: 1, 64>}, {pipeline_mode = #tpu.pipeline_mode<synchronous>, transform_indices = @transform_7, window_bounds = array<i64: 64, 128>}, {pipeline_mode = #tpu.pipeline_mode<synchronous>, transform_indices = @transform_8, window_bounds = array<i64: 1, 128>}, {transform_indices = @transform_9, window_bounds = array<i64: 16, 128>}]} {
    %cst = arith.constant 0.000000e+00 : f32
    %0 = vector.broadcast %cst : f32 to vector<16x128xf32>
    %c0 = arith.constant 0 : index
    %c0_0 = arith.constant 0 : index
    %1 = vector.load %arg1[%c0, %c0_0] : memref<16x64xf32, #tpu.memory_space<vmem>>, vector<16x64xf32>
    %c0_i32 = arith.constant 0 : i32
    %c20_i32 = arith.constant 20 : i32
    %2 = arith.addi %c0_i32, %c20_i32 : i32
    %c1_i32 = arith.constant 1 : i32
    %3:2 = scf.for %arg11 = %c0_i32 to %2 step %c1_i32 iter_args(%arg12 = %1, %arg13 = %0) -> (vector<16x64xf32>, vector<16x128xf32>)  : i32 {
      %5 = arith.truncf %arg12 : vector<16x64xf32> to vector<16x64xbf16>
      %c0_3 = arith.constant 0 : index
      %c0_4 = arith.constant 0 : index
      %6 = vector.load %arg3[%c0_3, %c0_4] : memref<64x128xbf16, #tpu.memory_space<vmem>>, vector<64x128xbf16>
      %cst_5 = arith.constant dense<0.000000e+00> : vector<16x128xf32>
      %7 = tpu.matmul %5, %6, %cst_5 {dimension_numbers = #tpu.dot_dimension_numbers<[1], [0], [0], [1], [0, 0, 1, 1], [], []>} : vector<16x64xbf16>, vector<64x128xbf16>, vector<16x128xf32> -> vector<16x128xf32>
      %8 = vector.extract_strided_slice %arg13 {offsets = [0, 0], sizes = [16, 1], strides = [1, 1]} : vector<16x128xf32> to vector<16x1xf32>
      %c0_6 = arith.constant 0 : index
      %c0_7 = arith.constant 0 : index
      %9 = vector.load %arg5[%c0_6, %c0_7] : memref<2x192xf32, #tpu.memory_space<vmem>>, vector<1x192xf32>
      %10 = vector.broadcast %8 : vector<16x1xf32> to vector<16x192xf32>
      %11 = vector.broadcast %9 : vector<1x192xf32> to vector<16x192xf32>
      %12 = arith.mulf %10, %11 : vector<16x192xf32>
      %13 = vector.extract_strided_slice %arg13 {offsets = [0, 1], sizes = [16, 1], strides = [1, 1]} : vector<16x128xf32> to vector<16x1xf32>
      %c1 = arith.constant 1 : index
      %c0_8 = arith.constant 0 : index
      %14 = vector.load %arg5[%c1, %c0_8] : memref<2x192xf32, #tpu.memory_space<vmem>>, vector<1x192xf32>
      %15 = vector.broadcast %13 : vector<16x1xf32> to vector<16x192xf32>
      %16 = vector.broadcast %14 : vector<1x192xf32> to vector<16x192xf32>
      %17 = arith.mulf %15, %16 : vector<16x192xf32>
      %18 = arith.addf %12, %17 : vector<16x192xf32>
      %19 = vector.extract_strided_slice %18 {offsets = [0, 0], sizes = [16, 128], strides = [1, 1]} : vector<16x192xf32> to vector<16x128xf32>
      %20 = arith.addf %7, %19 : vector<16x128xf32>
      %c0_9 = arith.constant 0 : index
      %c0_10 = arith.constant 0 : index
      %21 = vector.load %arg2[%c0_9, %c0_10] : memref<16x192xf32, #tpu.memory_space<vmem>>, vector<16x128xf32>
      %22 = arith.addf %20, %21 : vector<16x128xf32>
      %23 = arith.negf %22 : vector<16x128xf32>
      %24 = math.exp %23 : vector<16x128xf32>
      %cst_11 = arith.constant 1.000000e+00 : f32
      %25 = vector.broadcast %cst_11 : f32 to vector<16x128xf32>
      %26 = arith.addf %25, %24 : vector<16x128xf32>
      %27 = arith.divf %25, %26 : vector<16x128xf32>
      %28 = vector.extract_strided_slice %27 {offsets = [0, 0], sizes = [16, 64], strides = [1, 1]} : vector<16x128xf32> to vector<16x64xf32>
      %29 = vector.extract_strided_slice %27 {offsets = [0, 64], sizes = [16, 64], strides = [1, 1]} : vector<16x128xf32> to vector<16x64xf32>
      %30 = arith.mulf %29, %arg12 : vector<16x64xf32>
      %31 = arith.truncf %30 : vector<16x64xf32> to vector<16x64xbf16>
      %c0_12 = arith.constant 0 : index
      %c0_13 = arith.constant 0 : index
      %32 = vector.load %arg4[%c0_12, %c0_13] : memref<64x64xbf16, #tpu.memory_space<vmem>>, vector<64x64xbf16>
      %cst_14 = arith.constant dense<0.000000e+00> : vector<16x64xf32>
      %33 = tpu.matmul %31, %32, %cst_14 {dimension_numbers = #tpu.dot_dimension_numbers<[1], [0], [0], [1], [0, 0, 1, 1], [], []>} : vector<16x64xbf16>, vector<64x64xbf16>, vector<16x64xf32> -> vector<16x64xf32>
      %34 = vector.extract_strided_slice %18 {offsets = [0, 128], sizes = [16, 64], strides = [1, 1]} : vector<16x192xf32> to vector<16x64xf32>
      %35 = arith.addf %33, %34 : vector<16x64xf32>
      %c0_15 = arith.constant 0 : index
      %c128 = arith.constant 128 : index
      %36 = vector.load %arg2[%c0_15, %c128] : memref<16x192xf32, #tpu.memory_space<vmem>>, vector<16x64xf32>
      %37 = arith.addf %35, %36 : vector<16x64xf32>
      %38 = math.tanh %37 : vector<16x64xf32>
      %cst_16 = arith.constant 1.000000e+00 : f32
      %39 = vector.broadcast %cst_16 : f32 to vector<16x64xf32>
      %40 = arith.subf %39, %28 : vector<16x64xf32>
      %41 = arith.mulf %40, %arg12 : vector<16x64xf32>
      %42 = arith.mulf %28, %38 : vector<16x64xf32>
      %43 = arith.addf %41, %42 : vector<16x64xf32>
      %44 = arith.truncf %43 : vector<16x64xf32> to vector<16x64xbf16>
      %c0_17 = arith.constant 0 : index
      %c0_18 = arith.constant 0 : index
      %45 = vector.load %arg6[%c0_17, %c0_18] : memref<64x64xbf16, #tpu.memory_space<vmem>>, vector<64x64xbf16>
      %cst_19 = arith.constant dense<0.000000e+00> : vector<16x64xf32>
      %46 = tpu.matmul %44, %45, %cst_19 {dimension_numbers = #tpu.dot_dimension_numbers<[1], [0], [0], [1], [0, 0, 1, 1], [], []>} : vector<16x64xbf16>, vector<64x64xbf16>, vector<16x64xf32> -> vector<16x64xf32>
      %c0_20 = arith.constant 0 : index
      %c0_21 = arith.constant 0 : index
      %47 = vector.load %arg7[%c0_20, %c0_21] : memref<1x64xf32, #tpu.memory_space<vmem>>, vector<1x64xf32>
      %48 = vector.broadcast %47 : vector<1x64xf32> to vector<16x64xf32>
      %49 = arith.addf %46, %48 : vector<16x64xf32>
      %cst_22 = arith.constant 0.000000e+00 : f32
      %50 = vector.broadcast %cst_22 : f32 to vector<16x64xf32>
      %51 = arith.maximumf %49, %50 : vector<16x64xf32>
      %52 = arith.truncf %51 : vector<16x64xf32> to vector<16x64xbf16>
      %c0_23 = arith.constant 0 : index
      %c0_24 = arith.constant 0 : index
      %53 = vector.load %arg8[%c0_23, %c0_24] : memref<64x128xbf16, #tpu.memory_space<vmem>>, vector<64x128xbf16>
      %cst_25 = arith.constant dense<0.000000e+00> : vector<16x128xf32>
      %54 = tpu.matmul %52, %53, %cst_25 {dimension_numbers = #tpu.dot_dimension_numbers<[1], [0], [0], [1], [0, 0, 1, 1], [], []>} : vector<16x64xbf16>, vector<64x128xbf16>, vector<16x128xf32> -> vector<16x128xf32>
      %c0_26 = arith.constant 0 : index
      %c0_27 = arith.constant 0 : index
      %55 = vector.load %arg9[%c0_26, %c0_27] : memref<1x128xf32, #tpu.memory_space<vmem>>, vector<1x128xf32>
      %56 = vector.broadcast %55 : vector<1x128xf32> to vector<16x128xf32>
      %57 = arith.addf %54, %56 : vector<16x128xf32>
      %58 = arith.addf %arg13, %57 : vector<16x128xf32>
      scf.yield %43, %58 : vector<16x64xf32>, vector<16x128xf32>
    }
    %c0_1 = arith.constant 0 : index
    %c0_2 = arith.constant 0 : index
    %4 = vector.load %arg10[%c0_1, %c0_2] : memref<16x128xf32, #tpu.memory_space<vmem>>, vector<16x128xf32>
    tpu.vector_store %arg10[%c0_1, %c0_2], %3#1 {strides = array<i32>} : memref<16x128xf32, #tpu.memory_space<vmem>>, vector<16x128xf32>,
    return
  }
  func.func @transform_0(%arg0: i32) -> (i32, i32) {
    %c0_i32 = arith.constant 0 : i32
    %c0_i32_0 = arith.constant 0 : i32
    return %arg0, %c0_i32 : i32, i32
  }
  func.func @transform_1(%arg0: i32) -> (i32, i32) {
    %c0_i32 = arith.constant 0 : i32
    %c0_i32_0 = arith.constant 0 : i32
    return %arg0, %c0_i32 : i32, i32
  }
  func.func @transform_2(%arg0: i32) -> (i32, i32) {
    %c0_i32 = arith.constant 0 : i32
    %c0_i32_0 = arith.constant 0 : i32
    %c0_i32_1 = arith.constant 0 : i32
    return %c0_i32, %c0_i32_0 : i32, i32
  }
  func.func @transform_3(%arg0: i32) -> (i32, i32) {
    %c0_i32 = arith.constant 0 : i32
    %c0_i32_0 = arith.constant 0 : i32
    %c0_i32_1 = arith.constant 0 : i32
    return %c0_i32, %c0_i32_0 : i32, i32
  }
  func.func @transform_4(%arg0: i32) -> (i32, i32) {
    %c0_i32 = arith.constant 0 : i32
    %c0_i32_0 = arith.constant 0 : i32
    %c0_i32_1 = arith.constant 0 : i32
    return %c0_i32, %c0_i32_0 : i32, i32
  }
  func.func @transform_5(%arg0: i32) -> (i32, i32) {
    %c0_i32 = arith.constant 0 : i32
    %c0_i32_0 = arith.constant 0 : i32
    %c0_i32_1 = arith.constant 0 : i32
    return %c0_i32, %c0_i32_0 : i32, i32
  }
  func.func @transform_6(%arg0: i32) -> (i32, i32) {
    %c0_i32 = arith.constant 0 : i32
    %c0_i32_0 = arith.constant 0 : i32
    %c0_i32_1 = arith.constant 0 : i32
    return %c0_i32, %c0_i32_0 : i32, i32
  }
  func.func @transform_7(%arg0: i32) -> (i32, i32) {
    %c0_i32 = arith.constant 0 : i32
    %c0_i32_0 = arith.constant 0 : i32
    %c0_i32_1 = arith.constant 0 : i32
    return %c0_i32, %c0_i32_0 : i32, i32
  }
  func.func @transform_8(%arg0: i32) -> (i32, i32) {
    %c0_i32 = arith.constant 0 : i32
    %c0_i32_0 = arith.constant 0 : i32
    %c0_i32_1 = arith.constant 0 : i32
    return %c0_i32, %c0_i32_0 : i32, i32
  }
  func.func @transform_9(%arg0: i32) -> (i32, i32) {
    %c0_i32 = arith.constant 0 : i32
    %c0_i32_0 = arith.constant 0 : i32
    return %arg0, %c0_i32 : i32, i32
  }
}

</mosaic_0001>

<llo_original>
// kernel: raft_bi_forward.4
$region0: #{raft_bi_forward.4}
  #allocation0 [shape = 'u32[]', space=smem, size = 0x4, offset = 0x4, fixed_abs, tag = 'smem constant byte address 0x4 - core index']
  #allocation1 [shape = 'u32[144,128]{1,0:T(1,128)}', space=vmem, size = 0x12000, scoped, tag = 'internal scratch']
  %s0 = inlined_call_operand.vmem [shape: bf16[16,192], index: 0, kind: input, shape index: {}]
  %s1 = inlined_call_operand.vmem [shape: bf16[192,192], index: 1, kind: input, shape index: {}]
  %s2 = inlined_call_operand.vmem [shape: f32[1,192], index: 2, kind: input, shape index: {}]
  %s3 = inlined_call_operand.vmem [shape: f32[16,192], index: 3, kind: output, shape index: {}]
  %s4 = sld [smem:[#allocation0]]
  $region22: #{raft_bi_forward.4} parent=0
    _
  %s6 = ssub.s32 1, %s4
  %s7 = scalar_select 0, %s6, %s4
  // Predicated region
  $region2: #{raft_bi_forward.4} parent=0 // pred_check
    _
  $region3: #{raft_bi_forward.4} parent=0 // pred_check_branch
    %9 = sbr.rel (0) target = $region5
  $region4: #{raft_bi_forward.4} parent=0 // pred_region
    _
  $region5: #{raft_bi_forward.4} parent=0 // pred_fallthru
    _
  // Predicated region
  $region6: #{raft_bi_forward.4} parent=0 // pred_check
    _
  $region7: #{raft_bi_forward.4} parent=0 // pred_check_branch
    %11 = sbr.rel (0) target = $region9
  $region8: #{raft_bi_forward.4} parent=0 // pred_region
    _
  $region9: #{raft_bi_forward.4} parent=0 // pred_fallthru
    _
  // Predicated region
  $region10: #{raft_bi_forward.4} parent=0 // pred_check
    _
  $region11: #{raft_bi_forward.4} parent=0 // pred_check_branch
    %13 = sbr.rel (0) target = $region13
  $region12: #{raft_bi_forward.4} parent=0 // pred_region
    _
  $region13: #{raft_bi_forward.4} parent=0 // pred_fallthru
    _
  %v15 = vld [vmem:[%s0] sm:$0xff]
  %v16 = vld [vmem:[%s0 + $0x8] sm:$0xff]
  %v17 = vld [vmem:[%s1] sm:$0xff]
  %v18 = vld [vmem:[%s1 + $0x8] sm:$0xff]
  %v19 = vld [vmem:[%s1 + $0x10] sm:$0xff]
  %v20 = vld [vmem:[%s1 + $0x18] sm:$0xff]
  %v21 = vld [vmem:[%s1 + $0x20] sm:$0xff]
  %v22 = vld [vmem:[%s1 + $0x28] sm:$0xff]
  %v23 = vld [vmem:[%s1 + $0x30] sm:$0xff]
  %v24 = vld [vmem:[%s1 + $0x38] sm:$0xff]
  %v25 = vld [vmem:[%s1 + $0x40] sm:$0xff]
  %v26 = vld [vmem:[%s1 + $0x48] sm:$0xff]
  %v27 = vld [vmem:[%s1 + $0x50] sm:$0xff]
  %v28 = vld [vmem:[%s1 + $0x58] sm:$0xff]
  %v29 = vld [vmem:[%s1 + $0x60] sm:$0xff]
  %v30 = vld [vmem:[%s1 + $0x68] sm:$0xff]
  %v31 = vld [vmem:[%s1 + $0x70] sm:$0xff]
  %v32 = vld [vmem:[%s1 + $0x78] sm:$0xff]
  %v33 = vld [vmem:[%s1 + $0x80] sm:$0xff]
  %v34 = vld [vmem:[%s1 + $0x88] sm:$0xff]
  %v35 = vld [vmem:[%s1 + $0x90] sm:$0xff]
  %v36 = vld [vmem:[%s1 + $0x98] sm:$0xff]
  %v37 = vld [vmem:[%s1 + $0xa0] sm:$0xff]
  %v38 = vld [vmem:[%s1 + $0xa8] sm:$0xff]
  %v39 = vld [vmem:[%s1 + $0xb0] sm:$0xff]
  %v40 = vld [vmem:[%s1 + $0xb8] sm:$0xff]
  %v41 = vld [vmem:[%s2] sm:$0x3]
  %v43 = vlaneseq
  %v44 = vshrl.u32 %v43, 7
  %v45 = vsub.s32 0, %v44
  %v46 = vrot.slane %v41, %v45
  %v47 = vlaneseq
  %v48 = vshrl.u32 %v47, 7
  %v49 = vsub.s32 1, %v48
  %v50 = vrot.slane %v41, %v49
  %v55 = vunpack.c.l.b16 %v15
  %v56 = vunpack.c.h.b16 %v15
  %v57 = vunpack.c.l.b16 %v16
  %v58 = vunpack.c.h.b16 %v16
  %v59 = vpack.c.b16 %v57, %v55
  %v60 = vpack.c.b16 %v58, %v56
  %v86 = vunpack.c.l.b16 %v17
  %v87 = vunpack.c.h.b16 %v17
  %v88 = vunpack.c.l.b16 %v18
  %v89 = vunpack.c.h.b16 %v18
  %v90 = vunpack.c.l.b16 %v19
  %v91 = vunpack.c.h.b16 %v19
  %v92 = vunpack.c.l.b16 %v20
  %v93 = vunpack.c.h.b16 %v20
  %v94 = vunpack.c.l.b16 %v21
  %v95 = vunpack.c.h.b16 %v21
  %v96 = vunpack.c.l.b16 %v22
  %v97 = vunpack.c.h.b16 %v22
  %v98 = vunpack.c.l.b16 %v23
  %v99 = vunpack.c.h.b16 %v23
  %v100 = vunpack.c.l.b16 %v24
  %v101 = vunpack.c.h.b16 %v24
  %v102 = vunpack.c.l.b16 %v25
  %v103 = vunpack.c.h.b16 %v25
  %v104 = vunpack.c.l.b16 %v26
  %v105 = vunpack.c.h.b16 %v26
  %v106 = vunpack.c.l.b16 %v27
  %v107 = vunpack.c.h.b16 %v27
  %v108 = vunpack.c.l.b16 %v28
  %v109 = vunpack.c.h.b16 %v28
  %v110 = vunpack.c.l.b16 %v29
  %v111 = vunpack.c.h.b16 %v29
  %v112 = vunpack.c.l.b16 %v30
  %v113 = vunpack.c.h.b16 %v30
  %v114 = vunpack.c.l.b16 %v31
  %v115 = vunpack.c.h.b16 %v31
  %v116 = vunpack.c.l.b16 %v32
  %v117 = vunpack.c.h.b16 %v32
  %v118 = vunpack.c.l.b16 %v33
  %v119 = vunpack.c.h.b16 %v33
  %v120 = vunpack.c.l.b16 %v34
  %v121 = vunpack.c.h.b16 %v34
  %v122 = vunpack.c.l.b16 %v35
  %v123 = vunpack.c.h.b16 %v35
  %v124 = vunpack.c.l.b16 %v36
  %v125 = vunpack.c.h.b16 %v36
  %v126 = vunpack.c.l.b16 %v37
  %v127 = vunpack.c.h.b16 %v37
  %v128 = vunpack.c.l.b16 %v38
  %v129 = vunpack.c.h.b16 %v38
  %v130 = vunpack.c.l.b16 %v39
  %v131 = vunpack.c.h.b16 %v39
  %v132 = vunpack.c.l.b16 %v40
  %v133 = vunpack.c.h.b16 %v40
  %v134 = vpack.c.b16 %v88, %v86
  %v135 = vpack.c.b16 %v89, %v87
  %v136 = vpack.c.b16 %v92, %v90
  %v137 = vpack.c.b16 %v93, %v91
  %v138 = vpack.c.b16 %v96, %v94
  %v139 = vpack.c.b16 %v97, %v95
  %v140 = vpack.c.b16 %v100, %v98
  %v141 = vpack.c.b16 %v101, %v99
  %v142 = vpack.c.b16 %v104, %v102
  %v143 = vpack.c.b16 %v105, %v103
  %v144 = vpack.c.b16 %v108, %v106
  %v145 = vpack.c.b16 %v109, %v107
  %v146 = vpack.c.b16 %v112, %v110
  %v147 = vpack.c.b16 %v113, %v111
  %v148 = vpack.c.b16 %v116, %v114
  %v149 = vpack.c.b16 %v117, %v115
  %v150 = vpack.c.b16 %v120, %v118
  %v151 = vpack.c.b16 %v121, %v119
  %v152 = vpack.c.b16 %v124, %v122
  %v153 = vpack.c.b16 %v125, %v123
  %v154 = vpack.c.b16 %v128, %v126
  %v155 = vpack.c.b16 %v129, %v127
  %v156 = vpack.c.b16 %v132, %v130
  %v157 = vpack.c.b16 %v133, %v131
  %vm182 = vcmask 523264
  %v184 = vsel %vm182, %v60, 0
  %186 = vmatprep.subr.bf16.mxu0 %v135
  %187 = vmatpush1.bf16.msra.mxu0 %v134
  %188 = vmatprep.subr.bf16.mxu0 %v137
  %189 = vmatpush1.bf16.msra.mxu0 %v136
  %190 = vmatprep.subr.bf16.mxu0 %v139
  %191 = vmatpush1.bf16.msra.mxu0 %v138
  %192 = vmatprep.subr.bf16.mxu0 %v141
  %193 = vmatpush1.bf16.msra.mxu0 %v140
  %194 = vmatprep.subr.bf16.mxu0 %v143
  %195 = vmatpush1.bf16.msra.mxu0 %v142
  %196 = vmatprep.subr.bf16.mxu0 %v145
  %197 = vmatpush1.bf16.msra.mxu0 %v144
  %198 = vmatprep.subr.bf16.mxu0 %v147
  %199 = vmatpush1.bf16.msra.mxu0 %v146
  %200 = vmatprep.subr.bf16.mxu0 %v149
  %201 = vmatpush1.bf16.msra.mxu0 %v148
  %202 = vmatprep.subr.bf16.mxu0 %v151
  %203 = vmatpush1.bf16.msra.mxu0 %v150
  %204 = vmatprep.subr.bf16.mxu0 %v153
  %205 = vmatpush1.bf16.msra.mxu0 %v152
  %206 = vmatprep.subr.bf16.mxu0 %v155
  %207 = vmatpush1.bf16.msra.mxu0 %v154
  %208 = vmatprep.subr.bf16.mxu0 %v157
  %209 = vmatpush1.bf16.msra.mxu0 %v156
  %210 = vmatprep.subr.bf16.mxu0 0
  %211 = vmatpush1.bf16.msra.mxu0 0
  %212 = vmatprep.subr.bf16.mxu0 0
  %213 = vmatpush1.bf16.msra.mxu0 0
  %214 = vmatprep.subr.bf16.mxu0 0
  %215 = vmatpush1.bf16.msra.mxu0 0
  %216 = vmatprep.subr.bf16.mxu0 0
  %217 = vmatpush1.bf16.msra.mxu0 0
  %218 = vmatprep.mubr.bf16.mxu0 %v184
  %219 = vmatmul.mubr.bf16.gmra.mrb[0].mxu0 %v59
  %v220 = vpop.f32.mrb[0].mxu0
  %v221 = vadd.f32 %v46, %v220
  %v222 = vpop.f32.mrb[0].mxu0
  %v223 = vadd.f32 %v50, %v222
  %v224 = vpop.f32.mrb[0].mxu0
  %v225 = vadd.f32 %v46, %v224
  %v226 = vpop.f32.mrb[0].mxu0
  %v227 = vadd.f32 %v50, %v226
  %228 = vdwg.mxu0
  %v229 = vmax.f32 %v221, 0.0
  %v230 = vmax.f32 %v225, 0.0
  %231 = vst [vmem:[%s3] sm:$0xff] %v229
  %232 = vst [vmem:[%s3 + $0x10] sm:$0xff] %v230
  %v233 = vtanh.pop %v223
  %v234 = vtanh.pop %v227
  %235 = vst.msk [vmem:[%s3 + $0x8] sm:$0xff] %vm182, %v233
  %236 = vst.msk [vmem:[%s3 + $0x18] sm:$0xff] %vm182, %v234
  // Predicated region
  $region14: #{raft_bi_forward.4} parent=0 // pred_check
    _
  $region15: #{raft_bi_forward.4} parent=0 // pred_check_branch
    %238 = sbr.rel (0) target = $region17
  $region16: #{raft_bi_forward.4} parent=0 // pred_region
    _
  $region17: #{raft_bi_forward.4} parent=0 // pred_fallthru
    _
  // Predicated region
  $region18: #{raft_bi_forward.4} parent=0 // pred_check
    _
  $region19: #{raft_bi_forward.4} parent=0 // pred_check_branch
    %240 = sbr.rel (0) target = $region21
  $region20: #{raft_bi_forward.4} parent=0 // pred_region
    _
  $region21: #{raft_bi_forward.4} parent=0 // pred_fallthru
    _

// kernel: raft_bi_forward.5
$region0: #{raft_bi_forward.5}
  #allocation0 [shape = 'u32[]', space=smem, size = 0x4, offset = 0x4, fixed_abs, tag = 'smem constant byte address 0x4 - core index']
  #allocation1 [shape = 'u32[144,128]{1,0:T(1,128)}', space=vmem, size = 0x12000, scoped, tag = 'internal scratch']
  %s0 = inlined_call_operand.vmem [shape: bf16[2,4,64], index: 0, kind: input, shape index: {}]
  %s1 = inlined_call_operand.vmem [shape: bf16[2,4,64], index: 1, kind: input, shape index: {}]
  %s2 = inlined_call_operand.vmem [shape: bf16[4,4,4], index: 2, kind: output, shape index: {}]
  %s3 = sld [smem:[#allocation0]]
  $region49: #{raft_bi_forward.5} parent=0
    _
  %s5 = ssub.s32 1, %s3
  %s6 = scalar_select 0, %s5, %s3
  loop: start=0, step=1, limit=6
  $region2: #{raft_bi_forward.5} parent=0 // loop_pre_header
    _
  $region3: #{raft_bi_forward.5} parent=0 // loop_header
    %s8 = sphi 0, %s12
    %p9 = scmp.ge.s32.totalorder %s8, 6
    %s15 = sphi 0, %s41
    %s16 = sphi 0, %s37
    %s17 = sphi 0, %s33
    %s18 = sphi 0, %s29
    %s19 = sphi 0, %s15
    %s20 = sphi 0, %s16
    %s21 = sphi 0, %s17
    %s22 = sphi 0, %s18
    %s23 = sphi 0, %s19
    %s24 = sphi 0, %s20
    %s25 = sphi 0, %s21
    %s26 = sphi 0, %s22
    %s54 = sphi 0, %s56
    %s57 = sphi 0, %s54
    %s58 = sphi 0, %s57
    %s74 = sphi 0, %s58
    %s90 = sphi 0, %s92
    %s93 = sphi 0, %s90
    %s94 = sphi 0, %s93
    %s110 = sphi 0, %s94
    %s124 = sphi 0, %s126
    %s127 = sphi 0, %s124
    %s128 = sphi 0, %s127
    %s144 = sphi 0, %s128
  $region4: #{raft_bi_forward.5} parent=0 // loop_header_branch
    %11 = sbr.rel (%p9) target = $region8
  $region5: #{raft_bi_forward.5} parent=0 // loop_body
    %s13 = ssub.s32 %s8, 1
    %s14 = ssub.s32 %s8, 2
    %s27 = sadd.s32 1, %s18
    %p28 = scmp.ge.s32.totalorder %s27, 1
    %s29 = scalar_select %p28, 0, %s27
    %s30 = sadd.s32 1, %s17
    %s31 = scalar_select %p28, %s30, %s17
    %p32 = scmp.ge.s32.totalorder %s31, 1
    %s33 = scalar_select %p32, 0, %s31
    %s34 = sadd.s32 1, %s16
    %s35 = scalar_select %p32, %s34, %s16
    %p36 = scmp.ge.s32.totalorder %s35, 2
    %s37 = scalar_select %p36, 0, %s35
    %s38 = sadd.s32 1, %s15
    %s39 = scalar_select %p36, %s38, %s15
    %p40 = scmp.ge.s32.totalorder %s39, 2
    %s41 = scalar_select %p40, 0, %s39
    %s42 = ssub.s32 1, %s15
    %s43 = smul.u32 %s17, %s42
    %s44 = smul.u32 %s18, %s15
    %s45 = sadd.s32 %s43, %s44
    %s46 = ssub.s32 1, %s41
    %s47 = smul.u32 %s33, %s46
    %s48 = smul.u32 %s29, %s41
    %s49 = sadd.s32 %s47, %s48
    %s50 = ssub.s32 %s16, %s37
    %s51 = ssub.s32 %s45, %s49
    %s52 = sor.u32 %s50, %s51
    %p53 = scmp.eq.s32.totalorder %s52, 0
    %s55 = sadd.s32 %s54, 1
    %s56 = scalar_select %p53, %s54, %s55
    %p59 = pneg %p53
    %p60 = scmp.eq.s32.totalorder %s8, 3
    %p61 = por %p59, %p60
    %p62 = scmp.ne.s32.totalorder %s54, %s57
    %p63 = scmp.eq.s32.totalorder %s8, 0
    %p64 = por %p62, %p63
    %p65 = scmp.ne.s32.totalorder %s54, %s57
    %p66 = scmp.eq.s32.totalorder %s13, 3
    %p67 = por %p65, %p66
    %p68 = scmp.ne.s32.totalorder %s57, %s58
    %p69 = scmp.eq.s32.totalorder %s13, 0
    %p70 = por %p68, %p69
    %p71 = scmp.ne.s32.totalorder %s57, %s58
    %p72 = scmp.eq.s32.totalorder %s14, 3
    %p73 = por %p71, %p72
    %p75 = scmp.ne.s32.totalorder %s58, %s74
    %p76 = scmp.eq.s32.totalorder %s14, 0
    %p77 = por %p75, %p76
    %s78 = ssub.s32 1, %s15
    %s79 = smul.u32 %s18, %s78
    %s80 = smul.u32 %s17, %s15
    %s81 = sadd.s32 %s79, %s80
    %s82 = ssub.s32 1, %s41
    %s83 = smul.u32 %s29, %s82
    %s84 = smul.u32 %s33, %s41
    %s85 = sadd.s32 %s83, %s84
    %s86 = ssub.s32 %s16, %s37
    %s87 = ssub.s32 %s81, %s85
    %s88 = sor.u32 %s86, %s87
    %p89 = scmp.eq.s32.totalorder %s88, 0
    %s91 = sadd.s32 %s90, 1
    %s92 = scalar_select %p89, %s90, %s91
    %p95 = pneg %p89
    %p96 = scmp.eq.s32.totalorder %s8, 3
    %p97 = por %p95, %p96
    %p98 = scmp.ne.s32.totalorder %s90, %s93
    %p99 = scmp.eq.s32.totalorder %s8, 0
    %p100 = por %p98, %p99
    %p101 = scmp.ne.s32.totalorder %s90, %s93
    %p102 = scmp.eq.s32.totalorder %s13, 3
    %p103 = por %p101, %p102
    %p104 = scmp.ne.s32.totalorder %s93, %s94
    %p105 = scmp.eq.s32.totalorder %s13, 0
    %p106 = por %p104, %p105
    %p107 = scmp.ne.s32.totalorder %s93, %s94
    %p108 = scmp.eq.s32.totalorder %s14, 3
    %p109 = por %p107, %p108
    %p111 = scmp.ne.s32.totalorder %s94, %s110
    %p112 = scmp.eq.s32.totalorder %s14, 0
    %p113 = por %p111, %p112
    %s114 = smul.u32 %s15, 2
    %s115 = sadd.s32 %s114, %s16
    %s116 = smul.u32 %s41, 2
    %s117 = sadd.s32 %s116, %s37
    %s118 = ssub.s32 %s115, %s117
    %s119 = ssub.s32 %s17, %s33
    %s120 = sor.u32 %s118, %s119
    %s121 = ssub.s32 %s18, %s29
    %s122 = sor.u32 %s120, %s121
    %p123 = scmp.eq.s32.totalorder %s122, 0
    %s125 = sadd.s32 %s124, 1
    %s126 = scalar_select %p123, %s124, %s125
    %p129 = pneg %p123
    %p130 = scmp.eq.s32.totalorder %s8, 3
    %p131 = por %p129, %p130
    %p132 = scmp.ne.s32.totalorder %s124, %s127
    %p133 = scmp.eq.s32.totalorder %s8, 0
    %p134 = por %p132, %p133
    %p135 = scmp.ne.s32.totalorder %s124, %s127
    %p136 = scmp.eq.s32.totalorder %s13, 3
    %p137 = por %p135, %p136
    %p138 = scmp.ne.s32.totalorder %s127, %s128
    %p139 = scmp.eq.s32.totalorder %s13, 0
    %p140 = por %p138, %p139
    %p141 = scmp.ne.s32.totalorder %s127, %s128
    %p142 = scmp.eq.s32.totalorder %s14, 3
    %p143 = por %p141, %p142
    %p145 = scmp.ne.s32.totalorder %s128, %s144
    %p146 = scmp.eq.s32.totalorder %s14, 0
    %p147 = por %p145, %p146
    %p148 = scmp.le.s32.totalorder 1, %s8
    %p149 = scmp.lt.s32.totalorder %s8, 5
    %p150 = pnand %p148, %p149
    %p151 = pneg %p150
    // Predicated region
    $region9: #{raft_bi_forward.5} parent=5 // pred_check
      _
    $region10: #{raft_bi_forward.5} parent=5 // pred_check_branch
      %153 = sbr.rel (%p150) target = $region12
    $region11: #{raft_bi_forward.5} parent=5 // pred_region
      %s154 = ssub.s32 %s8, 1
    $region12: #{raft_bi_forward.5} parent=5 // pred_fallthru
      _
    %p155 = scmp.lt.s32.totalorder %s8, 4
    // Predicated region
    $region13: #{raft_bi_forward.5} parent=5 // pred_check
      %p156 = pneg %p155
    $region14: #{raft_bi_forward.5} parent=5 // pred_check_branch
      %158 = sbr.rel (%p156) target = $region16
    $region15: #{raft_bi_forward.5} parent=5 // pred_region
      // Predicated region
      $region17: #{raft_bi_forward.5} parent=15 // pred_check
        %p159 = pneg %p64
      $region18: #{raft_bi_forward.5} parent=15 // pred_check_branch
        %161 = sbr.rel (%p159) target = $region20
      $region19: #{raft_bi_forward.5} parent=15 // pred_region
        %s162 = ssub.s32 1, %s15
        %s163 = smul.u32 %s17, %s162
        %s164 = smul.u32 %s18, %s15
        %s165 = sadd.s32 %s163, %s164
        %p166 = scmp.lt.s32.totalorder %s16, 1
        %s167 = scalar_select %p166, %s16, 1
        %p168 = scmp.lt.s32.totalorder %s165, 0
        %s169 = scalar_select %p168, %s165, 0
        %s170 = sadd.s32 %s169, %s167
        %s171 = smul.addr %s170, 2
        %s172 = scalar_lea.vmem %s0, %s171
        %s173 = ssub.s32 1, %s15
        %s174 = smul.u32 %s17, %s173
        %s175 = smul.u32 %s18, %s15
        %s176 = sadd.s32 %s174, %s175
      $region20: #{raft_bi_forward.5} parent=15 // pred_fallthru
        _
      // Predicated region
      $region21: #{raft_bi_forward.5} parent=15 // pred_check
        %p177 = pneg %p100
      $region22: #{raft_bi_forward.5} parent=15 // pred_check_branch
        %179 = sbr.rel (%p177) target = $region24
      $region23: #{raft_bi_forward.5} parent=15 // pred_region
        %s180 = ssub.s32 1, %s15
        %s181 = smul.u32 %s18, %s180
        %s182 = smul.u32 %s17, %s15
        %s183 = sadd.s32 %s181, %s182
        %p184 = scmp.lt.s32.totalorder %s16, 1
        %s185 = scalar_select %p184, %s16, 1
        %p186 = scmp.lt.s32.totalorder %s183, 0
        %s187 = scalar_select %p186, %s183, 0
        %s188 = sadd.s32 %s187, %s185
        %s189 = smul.addr %s188, 2
        %s190 = scalar_lea.vmem %s1, %s189
        %s191 = ssub.s32 1, %s15
        %s192 = smul.u32 %s18, %s191
        %s193 = smul.u32 %s17, %s15
        %s194 = sadd.s32 %s192, %s193
      $region24: #{raft_bi_forward.5} parent=15 // pred_fallthru
        _
    $region16: #{raft_bi_forward.5} parent=5 // pred_fallthru
      _
    %p195 = scmp.le.s32.totalorder 1, %s8
    %p196 = scmp.lt.s32.totalorder %s8, 5
    %p197 = pnand %p195, %p196
    %p198 = pneg %p197
    // Predicated region
    $region25: #{raft_bi_forward.5} parent=5 // pred_check
      _
    $region26: #{raft_bi_forward.5} parent=5 // pred_check_branch
      %200 = sbr.rel (%p197) target = $region28
    $region27: #{raft_bi_forward.5} parent=5 // pred_region
      %s201 = ssub.s32 %s8, 1
      %s202 = ssub.s32 1, %s19
      %s203 = smul.u32 %s21, %s202
      %s204 = smul.u32 %s22, %s19
      %s205 = sadd.s32 %s203, %s204
      %p206 = scmp.lt.s32.totalorder %s20, 1
      %s207 = scalar_select %p206, %s20, 1
      %p208 = scmp.lt.s32.totalorder %s205, 0
      %s209 = scalar_select %p208, %s205, 0
      %s210 = sadd.s32 %s209, %s207
      %s211 = smul.addr %s210, 2
      %s212 = scalar_lea.vmem %s0, %s211
      %p213 = pneg %p70
      %p214 = pneg %p67
      %s215 = ssub.s32 1, %s19
      %s216 = smul.u32 %s22, %s215
      %s217 = smul.u32 %s21, %s19
      %s218 = sadd.s32 %s216, %s217
      %p219 = scmp.lt.s32.totalorder %s20, 1
      %s220 = scalar_select %p219, %s20, 1
      %p221 = scmp.lt.s32.totalorder %s218, 0
      %s222 = scalar_select %p221, %s218, 0
      %s223 = sadd.s32 %s222, %s220
      %s224 = smul.addr %s223, 2
      %s225 = scalar_lea.vmem %s1, %s224
      %p226 = pneg %p106
      %p227 = pneg %p103
      %p228 = pneg %p140
      %p229 = pneg %p137
      %s230 = smul.u32 %s19, 2
      %s231 = sadd.s32 %s230, %s20
      %p232 = scmp.lt.s32.totalorder %s231, 3
      %s233 = scalar_select %p232, %s231, 3
      %p234 = scmp.lt.s32.totalorder %s21, 0
      %s235 = scalar_select %p234, %s21, 0
      %p236 = scmp.lt.s32.totalorder %s22, 0
      %s237 = scalar_select %p236, %s22, 0
      %s238 = sadd.s32 %s237, %s235
      %s239 = sadd.s32 %s238, %s233
      %s240 = smul.addr %s239, 2
      %s241 = scalar_lea.vmem %s2, %s240
      %s242 = ssub.s32 1, %s19
      %s243 = smul.u32 %s21, %s242
      %s244 = smul.u32 %s22, %s19
      %s245 = sadd.s32 %s243, %s244
      %p246 = scmp.lt.s32.totalorder %s20, 1
      %s247 = scalar_select %p246, %s20, 1
      %p248 = scmp.lt.s32.totalorder %s245, 0
      %s249 = scalar_select %p248, %s245, 0
      %s250 = sadd.s32 %s249, %s247
      %s251 = smul.addr %s250, 2
      %s252 = scalar_lea.vmem %s0, %s251
      %s253 = ssub.s32 1, %s19
      %s254 = smul.u32 %s21, %s253
      %s255 = smul.u32 %s22, %s19
      %s256 = sadd.s32 %s254, %s255
      %s257 = ssub.s32 1, %s19
      %s258 = smul.u32 %s22, %s257
      %s259 = smul.u32 %s21, %s19
      %s260 = sadd.s32 %s258, %s259
      %p261 = scmp.lt.s32.totalorder %s20, 1
      %s262 = scalar_select %p261, %s20, 1
      %p263 = scmp.lt.s32.totalorder %s260, 0
      %s264 = scalar_select %p263, %s260, 0
      %s265 = sadd.s32 %s264, %s262
      %s266 = smul.addr %s265, 2
      %s267 = scalar_lea.vmem %s1, %s266
      %s268 = ssub.s32 1, %s19
      %s269 = smul.u32 %s22, %s268
      %s270 = smul.u32 %s21, %s19
      %s271 = sadd.s32 %s269, %s270
      %s272 = smul.u32 %s19, 2
      %s273 = sadd.s32 %s272, %s20
      %p274 = scmp.lt.s32.totalorder %s273, 3
      %s275 = scalar_select %p274, %s273, 3
      %p276 = scmp.lt.s32.totalorder %s21, 0
      %s277 = scalar_select %p276, %s21, 0
      %p278 = scmp.lt.s32.totalorder %s22, 0
      %s279 = scalar_select %p278, %s22, 0
      %s280 = sadd.s32 %s279, %s277
      %s281 = sadd.s32 %s280, %s275
      %s282 = smul.addr %s281, 2
      %s283 = scalar_lea.vmem %s2, %s282
      %s284 = smul.u32 %s19, 2
      %s285 = sadd.s32 %s284, %s20
      %p287 = scmp.eq.s32.totalorder %s19, 0
      // Predicated region
      $region29: #{raft_bi_forward.5} parent=27 // pred_check
        %p288 = pneg %p287
      $region30: #{raft_bi_forward.5} parent=27 // pred_check_branch
        %290 = sbr.rel (%p288) target = $region32
      $region31: #{raft_bi_forward.5} parent=27 // pred_region
        %v291 = vld [vmem:[%s252] sm:$0x3]
        %v292 = vld [vmem:[%s267] sm:$0x3]
        %vm293 = vcmask 523264
        %v295 = vsel %vm293, %v291, 0
        %v298 = vsel %vm293, %v292, 0
        %300 = vmatprep.subr.bf16.mxu0 0
        %301 = vmatpush1.bf16.xpose.msra.mxu0 %v298
        %302 = vmatprep.subr.bf16.mxu0 0
        %303 = vmatpush1.bf16.xpose.msra.mxu0 0
        %304 = vmatprep.subr.bf16.mxu0 0
        %305 = vmatpush1.bf16.xpose.msra.mxu0 0
        %306 = vmatprep.subr.bf16.mxu0 0
        %307 = vmatpush1.bf16.xpose.msra.mxu0 0
        %308 = vmatprep.subr.bf16.mxu0 0
        %309 = vmatpush1.bf16.xpose.msra.mxu0 0
        %310 = vmatprep.subr.bf16.mxu0 0
        %311 = vmatpush1.bf16.xpose.msra.mxu0 0
        %312 = vmatprep.subr.bf16.mxu0 0
        %313 = vmatpush1.bf16.xpose.msra.mxu0 0
        %314 = vmatprep.subr.bf16.mxu0 0
        %315 = vmatpush1.bf16.xpose.msra.mxu0 0
        %316 = vmatprep.subr.bf16.mxu0 0
        %317 = vmatpush1.bf16.xpose.msra.mxu0 0
        %318 = vmatprep.subr.bf16.mxu0 0
        %319 = vmatpush1.bf16.xpose.msra.mxu0 0
        %320 = vmatprep.subr.bf16.mxu0 0
        %321 = vmatpush1.bf16.xpose.msra.mxu0 0
        %322 = vmatprep.subr.bf16.mxu0 0
        %323 = vmatpush1.bf16.xpose.msra.mxu0 0
        %324 = vmatprep.subr.bf16.mxu0 0
        %325 = vmatpush1.bf16.xpose.msra.mxu0 0
        %326 = vmatprep.subr.bf16.mxu0 0
        %327 = vmatpush1.bf16.xpose.msra.mxu0 0
        %328 = vmatprep.subr.bf16.mxu0 0
        %329 = vmatpush1.bf16.xpose.msra.mxu0 0
        %330 = vmatprep.subr.bf16.mxu0 0
        %331 = vmatpush1.bf16.xpose.msra.mxu0 0
        %332 = vmatprep.mubr.bf16.mxu0 0
        %333 = vmatmul.mubr.bf16.gmra.mrb[0].mxu0 %v295
        %v334 = vpop.f32.mrb[0].mxu0
        %v335 = vadd.f32 0.0, %v334
        %v336 = vpop.f32.mrb[0].mxu0
        %v337 = vpop.f32.mrb[0].mxu0
        %v338 = vpop.f32.mrb[0].mxu0
        %339 = vdwg.mxu0
        %v340 = vmul.f32 %v335, 0.125
        %v341 = vpack.c.bf16 %v340, %v340
        %vm342 = vcmask 25600
        %343 = vst.msk [vmem:[%s283] sm:$0x3] %vm342, %v341
      $region32: #{raft_bi_forward.5} parent=27 // pred_fallthru
        _
      %p344 = scmp.eq.s32.totalorder %s19, 1
      // Predicated region
      $region33: #{raft_bi_forward.5} parent=27 // pred_check
        %p345 = pneg %p344
      $region34: #{raft_bi_forward.5} parent=27 // pred_check_branch
        %347 = sbr.rel (%p345) target = $region36
      $region35: #{raft_bi_forward.5} parent=27 // pred_region
        %v348 = vld [vmem:[%s267] sm:$0x3]
        %v349 = vld [vmem:[%s252] sm:$0x3]
        %vm350 = vcmask 523264
        %v352 = vsel %vm350, %v348, 0
        %v355 = vsel %vm350, %v349, 0
        %357 = vmatprep.subr.bf16.mxu0 0
        %358 = vmatpush1.bf16.xpose.msra.mxu0 %v355
        %359 = vmatprep.subr.bf16.mxu0 0
        %360 = vmatpush1.bf16.xpose.msra.mxu0 0
        %361 = vmatprep.subr.bf16.mxu0 0
        %362 = vmatpush1.bf16.xpose.msra.mxu0 0
        %363 = vmatprep.subr.bf16.mxu0 0
        %364 = vmatpush1.bf16.xpose.msra.mxu0 0
        %365 = vmatprep.subr.bf16.mxu0 0
        %366 = vmatpush1.bf16.xpose.msra.mxu0 0
        %367 = vmatprep.subr.bf16.mxu0 0
        %368 = vmatpush1.bf16.xpose.msra.mxu0 0
        %369 = vmatprep.subr.bf16.mxu0 0
        %370 = vmatpush1.bf16.xpose.msra.mxu0 0
        %371 = vmatprep.subr.bf16.mxu0 0
        %372 = vmatpush1.bf16.xpose.msra.mxu0 0
        %373 = vmatprep.subr.bf16.mxu0 0
        %374 = vmatpush1.bf16.xpose.msra.mxu0 0
        %375 = vmatprep.subr.bf16.mxu0 0
        %376 = vmatpush1.bf16.xpose.msra.mxu0 0
        %377 = vmatprep.subr.bf16.mxu0 0
        %378 = vmatpush1.bf16.xpose.msra.mxu0 0
        %379 = vmatprep.subr.bf16.mxu0 0
        %380 = vmatpush1.bf16.xpose.msra.mxu0 0
        %381 = vmatprep.subr.bf16.mxu0 0
        %382 = vmatpush1.bf16.xpose.msra.mxu0 0
        %383 = vmatprep.subr.bf16.mxu0 0
        %384 = vmatpush1.bf16.xpose.msra.mxu0 0
        %385 = vmatprep.subr.bf16.mxu0 0
        %386 = vmatpush1.bf16.xpose.msra.mxu0 0
        %387 = vmatprep.subr.bf16.mxu0 0
        %388 = vmatpush1.bf16.xpose.msra.mxu0 0
        %389 = vmatprep.mubr.bf16.mxu0 0
        %390 = vmatmul.mubr.bf16.gmra.mrb[0].mxu0 %v352
        %v391 = vpop.f32.mrb[0].mxu0
        %v392 = vadd.f32 0.0, %v391
        %v393 = vpop.f32.mrb[0].mxu0
        %v394 = vpop.f32.mrb[0].mxu0
        %v395 = vpop.f32.mrb[0].mxu0
        %396 = vdwg.mxu0
        %v397 = vmul.f32 %v392, 0.125
        %v398 = vpack.c.bf16 %v397, %v397
        %vm399 = vcmask 25600
        %400 = vst.msk [vmem:[%s283] sm:$0x3] %vm399, %v398
      $region36: #{raft_bi_forward.5} parent=27 // pred_fallthru
        _
      %s401 = smul.u32 %s19, 2
      %s402 = sadd.s32 %s401, %s20
      %p403 = scmp.lt.s32.totalorder %s402, 3
      %s404 = scalar_select %p403, %s402, 3
      %p405 = scmp.lt.s32.totalorder %s21, 0
      %s406 = scalar_select %p405, %s21, 0
      %p407 = scmp.lt.s32.totalorder %s22, 0
      %s408 = scalar_select %p407, %s22, 0
      %s409 = sadd.s32 %s408, %s406
      %s410 = sadd.s32 %s409, %s404
      %s411 = smul.addr %s410, 2
      %s412 = scalar_lea.vmem %s2, %s411
      // Predicated region
      $region37: #{raft_bi_forward.5} parent=27 // pred_check
        %p413 = pneg %p137
      $region38: #{raft_bi_forward.5} parent=27 // pred_check_branch
        %415 = sbr.rel (%p413) target = $region40
      $region39: #{raft_bi_forward.5} parent=27 // pred_region
        %s416 = smul.u32 %s19, 2
        %s417 = sadd.s32 %s416, %s20
      $region40: #{raft_bi_forward.5} parent=27 // pred_fallthru
        _
    $region28: #{raft_bi_forward.5} parent=5 // pred_fallthru
      _
    %p418 = scmp.le.s32.totalorder 2, %s8
    // Predicated region
    $region41: #{raft_bi_forward.5} parent=5 // pred_check
      %p419 = pneg %p418
    $region42: #{raft_bi_forward.5} parent=5 // pred_check_branch
      %421 = sbr.rel (%p419) target = $region44
    $region43: #{raft_bi_forward.5} parent=5 // pred_region
      %s422 = ssub.s32 %s8, 2
      // Predicated region
      $region45: #{raft_bi_forward.5} parent=43 // pred_check
        %p423 = pneg %p143
      $region46: #{raft_bi_forward.5} parent=43 // pred_check_branch
        %425 = sbr.rel (%p423) target = $region48
      $region47: #{raft_bi_forward.5} parent=43 // pred_region
        %s426 = smul.u32 %s23, 2
        %s427 = sadd.s32 %s426, %s24
        %p428 = scmp.lt.s32.totalorder %s427, 3
        %s429 = scalar_select %p428, %s427, 3
        %p430 = scmp.lt.s32.totalorder %s25, 0
        %s431 = scalar_select %p430, %s25, 0
        %p432 = scmp.lt.s32.totalorder %s26, 0
        %s433 = scalar_select %p432, %s26, 0
        %s434 = sadd.s32 %s433, %s431
        %s435 = sadd.s32 %s434, %s429
        %s436 = smul.addr %s435, 2
        %s437 = scalar_lea.vmem %s2, %s436
      $region48: #{raft_bi_forward.5} parent=43 // pred_fallthru
        _
    $region44: #{raft_bi_forward.5} parent=5 // pred_fallthru
      _
  $region6: #{raft_bi_forward.5} parent=0 // loop_footer
    %s12 = sadd.s32 1, %s8
  $region7: #{raft_bi_forward.5} parent=0 // loop_footer_branch
    %7 = sbr.rel target = $region3
  $region8: #{raft_bi_forward.5} parent=0 // loop_exit
    _

// kernel: raft_bi_forward.6
$region0: #{raft_bi_forward.6}
  #allocation0 [shape = 'u32[]', space=smem, size = 0x4, offset = 0x4, fixed_abs, tag = 'smem constant byte address 0x4 - core index']
  #allocation1 [shape = 'u32[144,128]{1,0:T(1,128)}', space=vmem, size = 0x12000, scoped, tag = 'internal scratch']
  %s0 = inlined_call_operand.vmem [shape: bf16[16,4], index: 0, kind: input, shape index: {}]
  %s1 = inlined_call_operand.vmem [shape: bf16[16,64], index: 1, kind: input, shape index: {}]
  %s2 = inlined_call_operand.vmem [shape: bf16[4,192], index: 2, kind: input, shape index: {}]
  %s3 = inlined_call_operand.vmem [shape: bf16[64,192], index: 3, kind: input, shape index: {}]
  %s4 = inlined_call_operand.vmem [shape: f32[1,192], index: 4, kind: input, shape index: {}]
  %s5 = inlined_call_operand.vmem [shape: f32[16,192], index: 5, kind: output, shape index: {}]
  %s6 = sld [smem:[#allocation0]]
  $region30: #{raft_bi_forward.6} parent=0
    _
  %s8 = ssub.s32 1, %s6
  %s9 = scalar_select 0, %s8, %s6
  // Predicated region
  $region2: #{raft_bi_forward.6} parent=0 // pred_check
    _
  $region3: #{raft_bi_forward.6} parent=0 // pred_check_branch
    %11 = sbr.rel (0) target = $region5
  $region4: #{raft_bi_forward.6} parent=0 // pred_region
    _
  $region5: #{raft_bi_forward.6} parent=0 // pred_fallthru
    _
  // Predicated region
  $region6: #{raft_bi_forward.6} parent=0 // pred_check
    _
  $region7: #{raft_bi_forward.6} parent=0 // pred_check_branch
    %13 = sbr.rel (0) target = $region9
  $region8: #{raft_bi_forward.6} parent=0 // pred_region
    _
  $region9: #{raft_bi_forward.6} parent=0 // pred_fallthru
    _
  // Predicated region
  $region10: #{raft_bi_forward.6} parent=0 // pred_check
    _
  $region11: #{raft_bi_forward.6} parent=0 // pred_check_branch
    %15 = sbr.rel (0) target = $region13
  $region12: #{raft_bi_forward.6} parent=0 // pred_region
    _
  $region13: #{raft_bi_forward.6} parent=0 // pred_fallthru
    _
  // Predicated region
  $region14: #{raft_bi_forward.6} parent=0 // pred_check
    _
  $region15: #{raft_bi_forward.6} parent=0 // pred_check_branch
    %17 = sbr.rel (0) target = $region17
  $region16: #{raft_bi_forward.6} parent=0 // pred_region
    _
  $region17: #{raft_bi_forward.6} parent=0 // pred_fallthru
    _
  // Predicated region
  $region18: #{raft_bi_forward.6} parent=0 // pred_check
    _
  $region19: #{raft_bi_forward.6} parent=0 // pred_check_branch
    %19 = sbr.rel (0) target = $region21
  $region20: #{raft_bi_forward.6} parent=0 // pred_region
    _
  $region21: #{raft_bi_forward.6} parent=0 // pred_fallthru
    _
  %v21 = vld [vmem:[%s0] sm:$0xf]
  %v22 = vld [vmem:[%s0 + $0x4] sm:$0xf]
  %v23 = vld [vmem:[%s2] sm:$0xf]
  %v24 = vld [vmem:[%s1] sm:$0xf]
  %v25 = vld [vmem:[%s1 + $0x4] sm:$0xf]
  %v26 = vld [vmem:[%s3] sm:$0xff]
  %v27 = vld [vmem:[%s3 + $0x8] sm:$0xff]
  %v28 = vld [vmem:[%s3 + $0x10] sm:$0xff]
  %v29 = vld [vmem:[%s3 + $0x18] sm:$0xff]
  %v30 = vld [vmem:[%s3 + $0x20] sm:$0xff]
  %v31 = vld [vmem:[%s3 + $0x28] sm:$0xff]
  %v32 = vld [vmem:[%s3 + $0x30] sm:$0xff]
  %v33 = vld [vmem:[%s3 + $0x38] sm:$0xff]
  %v36 = vunpack.c.l.b16 %v24
  %v37 = vunpack.c.l.b16 %v25
  %v38 = vpack.c.b16 %v37, %v36
  %v47 = vunpack.c.l.b16 %v26
  %v48 = vunpack.c.h.b16 %v26
  %v49 = vunpack.c.l.b16 %v27
  %v50 = vunpack.c.h.b16 %v27
  %v51 = vunpack.c.l.b16 %v28
  %v52 = vunpack.c.h.b16 %v28
  %v53 = vunpack.c.l.b16 %v29
  %v54 = vunpack.c.h.b16 %v29
  %v55 = vunpack.c.l.b16 %v30
  %v56 = vunpack.c.h.b16 %v30
  %v57 = vunpack.c.l.b16 %v31
  %v58 = vunpack.c.h.b16 %v31
  %v59 = vunpack.c.l.b16 %v32
  %v60 = vunpack.c.h.b16 %v32
  %v61 = vunpack.c.l.b16 %v33
  %v62 = vunpack.c.h.b16 %v33
  %v63 = vpack.c.b16 %v49, %v47
  %v64 = vpack.c.b16 %v50, %v48
  %v65 = vpack.c.b16 %v53, %v51
  %v66 = vpack.c.b16 %v54, %v52
  %v67 = vpack.c.b16 %v57, %v55
  %v68 = vpack.c.b16 %v58, %v56
  %v69 = vpack.c.b16 %v61, %v59
  %v70 = vpack.c.b16 %v62, %v60
  %vm79 = vcmask 523264
  %v81 = vsel %vm79, %v38, 0
  %83 = vmatprep.subr.bf16.mxu0 %v64
  %84 = vmatpush1.bf16.msra.mxu0 %v63
  %85 = vmatprep.subr.bf16.mxu0 %v66
  %86 = vmatpush1.bf16.msra.mxu0 %v65
  %87 = vmatprep.subr.bf16.mxu0 %v68
  %88 = vmatpush1.bf16.msra.mxu0 %v67
  %89 = vmatprep.subr.bf16.mxu0 %v70
  %90 = vmatpush1.bf16.msra.mxu0 %v69
  %91 = vmatprep.subr.bf16.mxu0 0
  %92 = vmatpush1.bf16.msra.mxu0 0
  %93 = vmatprep.subr.bf16.mxu0 0
  %94 = vmatpush1.bf16.msra.mxu0 0
  %95 = vmatprep.subr.bf16.mxu0 0
  %96 = vmatpush1.bf16.msra.mxu0 0
  %97 = vmatprep.subr.bf16.mxu0 0
  %98 = vmatpush1.bf16.msra.mxu0 0
  %99 = vmatprep.subr.bf16.mxu0 0
  %100 = vmatpush1.bf16.msra.mxu0 0
  %101 = vmatprep.subr.bf16.mxu0 0
  %102 = vmatpush1.bf16.msra.mxu0 0
  %103 = vmatprep.subr.bf16.mxu0 0
  %104 = vmatpush1.bf16.msra.mxu0 0
  %105 = vmatprep.subr.bf16.mxu0 0
  %106 = vmatpush1.bf16.msra.mxu0 0
  %107 = vmatprep.subr.bf16.mxu0 0
  %108 = vmatpush1.bf16.msra.mxu0 0
  %109 = vmatprep.subr.bf16.mxu0 0
  %110 = vmatpush1.bf16.msra.mxu0 0
  %111 = vmatprep.subr.bf16.mxu0 0
  %112 = vmatpush1.bf16.msra.mxu0 0
  %113 = vmatprep.subr.bf16.mxu0 0
  %114 = vmatpush1.bf16.msra.mxu0 0
  %115 = vmatprep.mubr.bf16.mxu0 0
  %116 = vmatmul.mubr.bf16.gmra.mrb[0].mxu0 %v81
  %v117 = vpop.f32.mrb[0].mxu0
  %v118 = vadd.f32 0.0, %v117
  %v119 = vpop.f32.mrb[0].mxu0
  %v120 = vadd.f32 0.0, %v119
  %v121 = vpop.f32.mrb[0].mxu0
  %v122 = vadd.f32 0.0, %v121
  %v123 = vpop.f32.mrb[0].mxu0
  %v124 = vadd.f32 0.0, %v123
  %125 = vdwg.mxu0
  %v128 = vunpack.c.l.b16 %v21
  %v129 = vunpack.c.l.b16 %v22
  %v130 = vpack.c.b16 %v129, %v128
  %v133 = vunpack.c.l.s4 1983009808
  %v134 = vunpack.c.0.s8 %v133
  %v135 = vlaneseq
  %v136 = vshrl.u32 %v135, 7
  %v137 = vsub.s32 %v134, %v136
  %v138 = vrot.slane %v23, %v137
  %v139 = vcombine.high %v138, %v138
  %vm140 = vcmask 31744
  %v142 = vsel %vm140, %v130, 0
  %vm144 = vcmask 1041408
  %v146 = vsel %vm144, %v138, 0
  %v149 = vsel %vm144, %v139, 0
  %151 = vmatprep.subr.bf16.mxu0 %v149
  %152 = vmatpush1.bf16.msra.mxu0 %v146
  %153 = vmatprep.subr.bf16.mxu0 0
  %154 = vmatpush1.bf16.msra.mxu0 0
  %155 = vmatprep.subr.bf16.mxu0 0
  %156 = vmatpush1.bf16.msra.mxu0 0
  %157 = vmatprep.subr.bf16.mxu0 0
  %158 = vmatpush1.bf16.msra.mxu0 0
  %159 = vmatprep.subr.bf16.mxu0 0
  %160 = vmatpush1.bf16.msra.mxu0 0
  %161 = vmatprep.subr.bf16.mxu0 0
  %162 = vmatpush1.bf16.msra.mxu0 0
  %163 = vmatprep.subr.bf16.mxu0 0
  %164 = vmatpush1.bf16.msra.mxu0 0
  %165 = vmatprep.subr.bf16.mxu0 0
  %166 = vmatpush1.bf16.msra.mxu0 0
  %167 = vmatprep.subr.bf16.mxu0 0
  %168 = vmatpush1.bf16.msra.mxu0 0
  %169 = vmatprep.subr.bf16.mxu0 0
  %170 = vmatpush1.bf16.msra.mxu0 0
  %171 = vmatprep.subr.bf16.mxu0 0
  %172 = vmatpush1.bf16.msra.mxu0 0
  %173 = vmatprep.subr.bf16.mxu0 0
  %174 = vmatpush1.bf16.msra.mxu0 0
  %175 = vmatprep.subr.bf16.mxu0 0
  %176 = vmatpush1.bf16.msra.mxu0 0
  %177 = vmatprep.subr.bf16.mxu0 0
  %178 = vmatpush1.bf16.msra.mxu0 0
  %179 = vmatprep.subr.bf16.mxu0 0
  %180 = vmatpush1.bf16.msra.mxu0 0
  %181 = vmatprep.subr.bf16.mxu0 0
  %182 = vmatpush1.bf16.msra.mxu0 0
  %183 = vmatprep.mubr.bf16.mxu0 0
  %184 = vmatmul.mubr.bf16.gmra.mrb[0].mxu0 %v142
  %v185 = vpop.f32.mrb[0].mxu0
  %v186 = vadd.f32 %v118, %v185
  %v187 = vpop.f32.mrb[0].mxu0
  %v188 = vadd.f32 %v120, %v187
  %v189 = vpop.f32.mrb[0].mxu0
  %v190 = vadd.f32 %v122, %v189
  %v191 = vpop.f32.mrb[0].mxu0
  %v192 = vadd.f32 %v124, %v191
  %193 = vdwg.mxu0
  %v194 = vld [vmem:[%s4] sm:$0x3]
  %v196 = vlaneseq
  %v197 = vshrl.u32 %v196, 7
  %v198 = vsub.s32 0, %v197
  %v199 = vrot.slane %v194, %v198
  %v200 = vlaneseq
  %v201 = vshrl.u32 %v200, 7
  %v202 = vsub.s32 1, %v201
  %v203 = vrot.slane %v194, %v202
  %v206 = vadd.f32 %v186, %v199
  %v207 = vadd.f32 %v188, %v203
  %v208 = vadd.f32 %v190, %v199
  %v209 = vadd.f32 %v192, %v203
  %210 = vst [vmem:[%s5] sm:$0xff] %v206
  %211 = vst.msk [vmem:[%s5 + $0x8] sm:$0xff] %vm79, %v207
  %212 = vst [vmem:[%s5 + $0x10] sm:$0xff] %v208
  %213 = vst.msk [vmem:[%s5 + $0x18] sm:$0xff] %vm79, %v209
  // Predicated region
  $region22: #{raft_bi_forward.6} parent=0 // pred_check
    _
  $region23: #{raft_bi_forward.6} parent=0 // pred_check_branch
    %215 = sbr.rel (0) target = $region25
  $region24: #{raft_bi_forward.6} parent=0 // pred_region
    _
  $region25: #{raft_bi_forward.6} parent=0 // pred_fallthru
    _
  // Predicated region
  $region26: #{raft_bi_forward.6} parent=0 // pred_check
    _
  $region27: #{raft_bi_forward.6} parent=0 // pred_check_branch
    %217 = sbr.rel (0) target = $region29
  $region28: #{raft_bi_forward.6} parent=0 // pred_region
    _
  $region29: #{raft_bi_forward.6} parent=0 // pred_fallthru
    _

// kernel: raft_bi_forward.7
$region0: #{raft_bi_forward.7}
  #allocation0 [shape = 'u32[]', space=smem, size = 0x4, offset = 0x4, fixed_abs, tag = 'smem constant byte address 0x4 - core index']
  #allocation1 [shape = 'u32[144,128]{1,0:T(1,128)}', space=vmem, size = 0x12000, scoped, tag = 'internal scratch']
  %s0 = inlined_call_operand.vmem [shape: f32[16,64], index: 0, kind: input, shape index: {}]
  %s1 = inlined_call_operand.vmem [shape: f32[16,192], index: 1, kind: input, shape index: {}]
  %s2 = inlined_call_operand.vmem [shape: bf16[64,128], index: 2, kind: input, shape index: {}]
  %s3 = inlined_call_operand.vmem [shape: bf16[64,64], index: 3, kind: input, shape index: {}]
  %s4 = inlined_call_operand.vmem [shape: f32[2,192], index: 4, kind: input, shape index: {}]
  %s5 = inlined_call_operand.vmem [shape: bf16[64,64], index: 5, kind: input, shape index: {}]
  %s6 = inlined_call_operand.vmem [shape: f32[1,64], index: 6, kind: input, shape index: {}]
  %s7 = inlined_call_operand.vmem [shape: bf16[64,128], index: 7, kind: input, shape index: {}]
  %s8 = inlined_call_operand.vmem [shape: f32[1,128], index: 8, kind: input, shape index: {}]
  %s9 = inlined_call_operand.vmem [shape: f32[16,128], index: 9, kind: output, shape index: {}]
  %s10 = sld [smem:[#allocation0]]
  $region53: #{raft_bi_forward.7} parent=0
    _
  %s12 = ssub.s32 1, %s10
  %s13 = scalar_select 0, %s12, %s10
  // Predicated region
  $region2: #{raft_bi_forward.7} parent=0 // pred_check
    _
  $region3: #{raft_bi_forward.7} parent=0 // pred_check_branch
    %15 = sbr.rel (0) target = $region5
  $region4: #{raft_bi_forward.7} parent=0 // pred_region
    _
  $region5: #{raft_bi_forward.7} parent=0 // pred_fallthru
    _
  // Predicated region
  $region6: #{raft_bi_forward.7} parent=0 // pred_check
    _
  $region7: #{raft_bi_forward.7} parent=0 // pred_check_branch
    %17 = sbr.rel (0) target = $region9
  $region8: #{raft_bi_forward.7} parent=0 // pred_region
    _
  $region9: #{raft_bi_forward.7} parent=0 // pred_fallthru
    _
  // Predicated region
  $region10: #{raft_bi_forward.7} parent=0 // pred_check
    _
  $region11: #{raft_bi_forward.7} parent=0 // pred_check_branch
    %19 = sbr.rel (0) target = $region13
  $region12: #{raft_bi_forward.7} parent=0 // pred_region
    _
  $region13: #{raft_bi_forward.7} parent=0 // pred_fallthru
    _
  // Predicated region
  $region14: #{raft_bi_forward.7} parent=0 // pred_check
    _
  $region15: #{raft_bi_forward.7} parent=0 // pred_check_branch
    %21 = sbr.rel (0) target = $region17
  $region16: #{raft_bi_forward.7} parent=0 // pred_region
    _
  $region17: #{raft_bi_forward.7} parent=0 // pred_fallthru
    _
  // Predicated region
  $region18: #{raft_bi_forward.7} parent=0 // pred_check
    _
  $region19: #{raft_bi_forward.7} parent=0 // pred_check_branch
    %23 = sbr.rel (0) target = $region21
  $region20: #{raft_bi_forward.7} parent=0 // pred_region
    _
  $region21: #{raft_bi_forward.7} parent=0 // pred_fallthru
    _
  // Predicated region
  $region22: #{raft_bi_forward.7} parent=0 // pred_check
    _
  $region23: #{raft_bi_forward.7} parent=0 // pred_check_branch
    %25 = sbr.rel (0) target = $region25
  $region24: #{raft_bi_forward.7} parent=0 // pred_region
    _
  $region25: #{raft_bi_forward.7} parent=0 // pred_fallthru
    _
  // Predicated region
  $region26: #{raft_bi_forward.7} parent=0 // pred_check
    _
  $region27: #{raft_bi_forward.7} parent=0 // pred_check_branch
    %27 = sbr.rel (0) target = $region29
  $region28: #{raft_bi_forward.7} parent=0 // pred_region
    _
  $region29: #{raft_bi_forward.7} parent=0 // pred_fallthru
    _
  // Predicated region
  $region30: #{raft_bi_forward.7} parent=0 // pred_check
    _
  $region31: #{raft_bi_forward.7} parent=0 // pred_check_branch
    %29 = sbr.rel (0) target = $region33
  $region32: #{raft_bi_forward.7} parent=0 // pred_region
    _
  $region33: #{raft_bi_forward.7} parent=0 // pred_fallthru
    _
  // Predicated region
  $region34: #{raft_bi_forward.7} parent=0 // pred_check
    _
  $region35: #{raft_bi_forward.7} parent=0 // pred_check_branch
    %31 = sbr.rel (0) target = $region37
  $region36: #{raft_bi_forward.7} parent=0 // pred_region
    _
  $region37: #{raft_bi_forward.7} parent=0 // pred_fallthru
    _
  %v33 = vld [vmem:[%s0] sm:$0xff]
  %v34 = vld [vmem:[%s0 + $0x8] sm:$0xff]
  loop: start=0, step=1, limit=20
  $region38: #{raft_bi_forward.7} parent=0 // loop_pre_header
    _
  $region39: #{raft_bi_forward.7} parent=0 // loop_header
    %s36 = sphi 0, %s40
    %p37 = scmp.ge.s32.totalorder %s36, 20
    %v41 = vphi %v33, %v296
    %v42 = vphi %v34, %v297
    %v43 = vphi 0.0, %v468
    %v44 = vphi 0.0, %v469
  $region40: #{raft_bi_forward.7} parent=0 // loop_header_branch
    %39 = sbr.rel (%p37) target = $region44
  $region41: #{raft_bi_forward.7} parent=0 // loop_body
    %v45 = vpack.c.bf16 %v42, %v41
    %v46 = vld [vmem:[%s2] sm:$0xf]
    %v47 = vld [vmem:[%s2 + $0x4] sm:$0xf]
    %v48 = vld [vmem:[%s2 + $0x8] sm:$0xf]
    %v49 = vld [vmem:[%s2 + $0xc] sm:$0xf]
    %v50 = vld [vmem:[%s2 + $0x10] sm:$0xf]
    %v51 = vld [vmem:[%s2 + $0x14] sm:$0xf]
    %v52 = vld [vmem:[%s2 + $0x18] sm:$0xf]
    %v53 = vld [vmem:[%s2 + $0x1c] sm:$0xf]
    %v54 = vld [vmem:[%s4] ss:$2 sm:$0x3]
    %56 = vset.pattern.permute.xlu0 0
    %57 = vperm.xlu0 %56, %v43
    %v58 = vpop.permute.xlu0 %57
    %61 = vset.pattern.permute.xlu0 0
    %62 = vperm.xlu0 %61, %v44
    %v63 = vpop.permute.xlu0 %62
    %v66 = vlaneseq
    %v67 = vshrl.u32 %v66, 7
    %v68 = vsub.s32 0, %v67
    %v69 = vrot.slane %v54, %v68
    %v70 = vlaneseq
    %v71 = vshrl.u32 %v70, 7
    %v72 = vsub.s32 1, %v71
    %v73 = vrot.slane %v54, %v72
    %v76 = vmul.f32 %v58, %v69
    %v77 = vmul.f32 %v58, %v73
    %v78 = vmul.f32 %v63, %v69
    %v79 = vmul.f32 %v63, %v73
    %s80 = scalar_lea.vmem %s4, 1
    %v81 = vld [vmem:[%s80] ss:$2 sm:$0x3]
    %82 = vset.pattern.permute.xlu0 1
    %83 = vperm.xlu0 %82, %v43
    %v84 = vpop.permute.xlu0 %83
    %86 = vset.pattern.permute.xlu0 1
    %87 = vperm.xlu0 %86, %v44
    %v88 = vpop.permute.xlu0 %87
    %v91 = vlaneseq
    %v92 = vshrl.u32 %v91, 7
    %v93 = vsub.s32 0, %v92
    %v94 = vrot.slane %v81, %v93
    %v95 = vlaneseq
    %v96 = vshrl.u32 %v95, 7
    %v97 = vsub.s32 1, %v96
    %v98 = vrot.slane %v81, %v97
    %v101 = vmul.f32 %v84, %v94
    %v102 = vmul.f32 %v84, %v98
    %v103 = vmul.f32 %v88, %v94
    %v104 = vmul.f32 %v88, %v98
    %v105 = vadd.f32 %v76, %v101
    %v106 = vadd.f32 %v77, %v102
    %v107 = vadd.f32 %v78, %v103
    %v108 = vadd.f32 %v79, %v104
    %v117 = vunpack.c.l.b16 %v46
    %v118 = vunpack.c.l.b16 %v47
    %v119 = vunpack.c.l.b16 %v48
    %v120 = vunpack.c.l.b16 %v49
    %v121 = vunpack.c.l.b16 %v50
    %v122 = vunpack.c.l.b16 %v51
    %v123 = vunpack.c.l.b16 %v52
    %v124 = vunpack.c.l.b16 %v53
    %v125 = vpack.c.b16 %v118, %v117
    %v126 = vpack.c.b16 %v120, %v119
    %v127 = vpack.c.b16 %v122, %v121
    %v128 = vpack.c.b16 %v124, %v123
    %vm133 = vcmask 523264
    %v135 = vsel %vm133, %v45, 0
    %137 = vmatprep.subr.bf16.mxu0 0
    %138 = vmatpush1.bf16.msra.mxu0 %v125
    %139 = vmatprep.subr.bf16.mxu0 0
    %140 = vmatpush1.bf16.msra.mxu0 %v126
    %141 = vmatprep.subr.bf16.mxu0 0
    %142 = vmatpush1.bf16.msra.mxu0 %v127
    %143 = vmatprep.subr.bf16.mxu0 0
    %144 = vmatpush1.bf16.msra.mxu0 %v128
    %145 = vmatprep.subr.bf16.mxu0 0
    %146 = vmatpush1.bf16.msra.mxu0 0
    %147 = vmatprep.subr.bf16.mxu0 0
    %148 = vmatpush1.bf16.msra.mxu0 0
    %149 = vmatprep.subr.bf16.mxu0 0
    %150 = vmatpush1.bf16.msra.mxu0 0
    %151 = vmatprep.subr.bf16.mxu0 0
    %152 = vmatpush1.bf16.msra.mxu0 0
    %153 = vmatprep.subr.bf16.mxu0 0
    %154 = vmatpush1.bf16.msra.mxu0 0
    %155 = vmatprep.subr.bf16.mxu0 0
    %156 = vmatpush1.bf16.msra.mxu0 0
    %157 = vmatprep.subr.bf16.mxu0 0
    %158 = vmatpush1.bf16.msra.mxu0 0
    %159 = vmatprep.subr.bf16.mxu0 0
    %160 = vmatpush1.bf16.msra.mxu0 0
    %161 = vmatprep.subr.bf16.mxu0 0
    %162 = vmatpush1.bf16.msra.mxu0 0
    %163 = vmatprep.subr.bf16.mxu0 0
    %164 = vmatpush1.bf16.msra.mxu0 0
    %165 = vmatprep.subr.bf16.mxu0 0
    %166 = vmatpush1.bf16.msra.mxu0 0
    %167 = vmatprep.subr.bf16.mxu0 0
    %168 = vmatpush1.bf16.msra.mxu0 0
    %169 = vmatprep.mubr.bf16.mxu0 0
    %170 = vmatmul.mubr.bf16.gmra.mrb[0].mxu0 %v135
    %v171 = vpop.f32.mrb[0].mxu0
    %v172 = vadd.f32 %v105, %v171
    %v173 = vpop.f32.mrb[0].mxu0
    %v174 = vpop.f32.mrb[0].mxu0
    %v175 = vadd.f32 %v107, %v174
    %v176 = vpop.f32.mrb[0].mxu0
    %177 = vdwg.mxu0
    %v178 = vld [vmem:[%s1] sm:$0xff]
    %v179 = vld [vmem:[%s1 + $0x10] sm:$0xff]
    %v180 = vadd.f32 %v172, %v178
    %v181 = vadd.f32 %v175, %v179
    %v182 = vxor.u32 %v180, 2147483648
    %v183 = vxor.u32 %v181, 2147483648
    %v184 = vmul.f32 %v182, 1.442695
    %v185 = vpow.pop %v184
    %v186 = vmul.f32 %v183, 1.442695
    %v187 = vpow.pop %v186
    %v188 = vadd.f32 %v185, 1.0
    %v189 = vadd.f32 %v187, 1.0
    %v190 = vrcp.pop %v188
    %v191 = vmul.f32 1.0, %v190
    %v192 = vrcp.pop %v189
    %v193 = vmul.f32 1.0, %v192
    %196 = vrot.lane.b32.xlu0 %v41, 64
    %v197 = vpop.permute.xlu0 %196
    %198 = vrot.lane.b32.xlu0 %v42, 64
    %v199 = vpop.permute.xlu0 %198
    %v202 = vmul.f32 %v191, %v197
    %v203 = vmul.f32 %v193, %v199
    %v204 = vpack.c.bf16 %v203, %v202
    %v205 = vld [vmem:[%s3] sm:$0xf]
    %v206 = vld [vmem:[%s3 + $0x4] sm:$0xf]
    %v207 = vld [vmem:[%s3 + $0x8] sm:$0xf]
    %v208 = vld [vmem:[%s3 + $0xc] sm:$0xf]
    %v209 = vld [vmem:[%s3 + $0x10] sm:$0xf]
    %v210 = vld [vmem:[%s3 + $0x14] sm:$0xf]
    %v211 = vld [vmem:[%s3 + $0x18] sm:$0xf]
    %v212 = vld [vmem:[%s3 + $0x1c] sm:$0xf]
    %214 = vrot.lane.b32.xlu0 %v204, 64
    %v215 = vpop.permute.xlu0 %214
    %v224 = vunpack.c.l.b16 %v205
    %v225 = vunpack.c.l.b16 %v206
    %v226 = vunpack.c.l.b16 %v207
    %v227 = vunpack.c.l.b16 %v208
    %v228 = vunpack.c.l.b16 %v209
    %v229 = vunpack.c.l.b16 %v210
    %v230 = vunpack.c.l.b16 %v211
    %v231 = vunpack.c.l.b16 %v212
    %v232 = vpack.c.b16 %v225, %v224
    %v233 = vpack.c.b16 %v227, %v226
    %v234 = vpack.c.b16 %v229, %v228
    %v235 = vpack.c.b16 %v231, %v230
    %v241 = vsel %vm133, %v215, 0
    %243 = vmatprep.subr.bf16.mxu0 0
    %244 = vmatpush1.bf16.msra.mxu0 %v232
    %245 = vmatprep.subr.bf16.mxu0 0
    %246 = vmatpush1.bf16.msra.mxu0 %v233
    %247 = vmatprep.subr.bf16.mxu0 0
    %248 = vmatpush1.bf16.msra.mxu0 %v234
    %249 = vmatprep.subr.bf16.mxu0 0
    %250 = vmatpush1.bf16.msra.mxu0 %v235
    %251 = vmatprep.subr.bf16.mxu0 0
    %252 = vmatpush1.bf16.msra.mxu0 0
    %253 = vmatprep.subr.bf16.mxu0 0
    %254 = vmatpush1.bf16.msra.mxu0 0
    %255 = vmatprep.subr.bf16.mxu0 0
    %256 = vmatpush1.bf16.msra.mxu0 0
    %257 = vmatprep.subr.bf16.mxu0 0
    %258 = vmatpush1.bf16.msra.mxu0 0
    %259 = vmatprep.subr.bf16.mxu0 0
    %260 = vmatpush1.bf16.msra.mxu0 0
    %261 = vmatprep.subr.bf16.mxu0 0
    %262 = vmatpush1.bf16.msra.mxu0 0
    %263 = vmatprep.subr.bf16.mxu0 0
    %264 = vmatpush1.bf16.msra.mxu0 0
    %265 = vmatprep.subr.bf16.mxu0 0
    %266 = vmatpush1.bf16.msra.mxu0 0
    %267 = vmatprep.subr.bf16.mxu0 0
    %268 = vmatpush1.bf16.msra.mxu0 0
    %269 = vmatprep.subr.bf16.mxu0 0
    %270 = vmatpush1.bf16.msra.mxu0 0
    %271 = vmatprep.subr.bf16.mxu0 0
    %272 = vmatpush1.bf16.msra.mxu0 0
    %273 = vmatprep.subr.bf16.mxu0 0
    %274 = vmatpush1.bf16.msra.mxu0 0
    %275 = vmatprep.mubr.bf16.mxu0 0
    %276 = vmatmul.mubr.bf16.gmra.mrb[0].mxu0 %v241
    %v277 = vpop.f32.mrb[0].mxu0
    %v278 = vadd.f32 %v106, %v277
    %v279 = vpop.f32.mrb[0].mxu0
    %v280 = vpop.f32.mrb[0].mxu0
    %v281 = vadd.f32 %v108, %v280
    %v282 = vpop.f32.mrb[0].mxu0
    %283 = vdwg.mxu0
    %v284 = vld [vmem:[%s1 + $0x8] sm:$0xff]
    %v285 = vld [vmem:[%s1 + $0x18] sm:$0xff]
    %v286 = vadd.f32 %v278, %v284
    %v287 = vadd.f32 %v281, %v285
    %v288 = vtanh.pop %v286
    %v289 = vtanh.pop %v287
    %v290 = vsub.f32 1.0, %v191
    %v291 = vsub.f32 1.0, %v193
    %v292 = vmul.f32 %v290, %v41
    %v293 = vmul.f32 %v291, %v42
    %v294 = vmul.f32 %v191, %v288
    %v295 = vmul.f32 %v193, %v289
    %v296 = vadd.f32 %v292, %v294
    %v297 = vadd.f32 %v293, %v295
    %v298 = vpack.c.bf16 %v297, %v296
    %v299 = vld [vmem:[%s5] sm:$0xf]
    %v300 = vld [vmem:[%s5 + $0x4] sm:$0xf]
    %v301 = vld [vmem:[%s5 + $0x8] sm:$0xf]
    %v302 = vld [vmem:[%s5 + $0xc] sm:$0xf]
    %v303 = vld [vmem:[%s5 + $0x10] sm:$0xf]
    %v304 = vld [vmem:[%s5 + $0x14] sm:$0xf]
    %v305 = vld [vmem:[%s5 + $0x18] sm:$0xf]
    %v306 = vld [vmem:[%s5 + $0x1c] sm:$0xf]
    %v307 = vld [vmem:[%s6] sm:$0x1]
    %v309 = vlaneseq
    %v310 = vshrl.u32 %v309, 7
    %v311 = vsub.s32 0, %v310
    %v312 = vrot.slane %v307, %v311
    %v322 = vunpack.c.l.b16 %v299
    %v323 = vunpack.c.l.b16 %v300
    %v324 = vunpack.c.l.b16 %v301
    %v325 = vunpack.c.l.b16 %v302
    %v326 = vunpack.c.l.b16 %v303
    %v327 = vunpack.c.l.b16 %v304
    %v328 = vunpack.c.l.b16 %v305
    %v329 = vunpack.c.l.b16 %v306
    %v330 = vpack.c.b16 %v323, %v322
    %v331 = vpack.c.b16 %v325, %v324
    %v332 = vpack.c.b16 %v327, %v326
    %v333 = vpack.c.b16 %v329, %v328
    %v339 = vsel %vm133, %v298, 0
    %341 = vmatprep.subr.bf16.mxu0 0
    %342 = vmatpush1.bf16.msra.mxu0 %v330
    %343 = vmatprep.subr.bf16.mxu0 0
    %344 = vmatpush1.bf16.msra.mxu0 %v331
    %345 = vmatprep.subr.bf16.mxu0 0
    %346 = vmatpush1.bf16.msra.mxu0 %v332
    %347 = vmatprep.subr.bf16.mxu0 0
    %348 = vmatpush1.bf16.msra.mxu0 %v333
    %349 = vmatprep.subr.bf16.mxu0 0
    %350 = vmatpush1.bf16.msra.mxu0 0
    %351 = vmatprep.subr.bf16.mxu0 0
    %352 = vmatpush1.bf16.msra.mxu0 0
    %353 = vmatprep.subr.bf16.mxu0 0
    %354 = vmatpush1.bf16.msra.mxu0 0
    %355 = vmatprep.subr.bf16.mxu0 0
    %356 = vmatpush1.bf16.msra.mxu0 0
    %357 = vmatprep.subr.bf16.mxu0 0
    %358 = vmatpush1.bf16.msra.mxu0 0
    %359 = vmatprep.subr.bf16.mxu0 0
    %360 = vmatpush1.bf16.msra.mxu0 0
    %361 = vmatprep.subr.bf16.mxu0 0
    %362 = vmatpush1.bf16.msra.mxu0 0
    %363 = vmatprep.subr.bf16.mxu0 0
    %364 = vmatpush1.bf16.msra.mxu0 0
    %365 = vmatprep.subr.bf16.mxu0 0
    %366 = vmatpush1.bf16.msra.mxu0 0
    %367 = vmatprep.subr.bf16.mxu0 0
    %368 = vmatpush1.bf16.msra.mxu0 0
    %369 = vmatprep.subr.bf16.mxu0 0
    %370 = vmatpush1.bf16.msra.mxu0 0
    %371 = vmatprep.subr.bf16.mxu0 0
    %372 = vmatpush1.bf16.msra.mxu0 0
    %373 = vmatprep.mubr.bf16.mxu0 0
    %374 = vmatmul.mubr.bf16.gmra.mrb[0].mxu0 %v339
    %v375 = vpop.f32.mrb[0].mxu0
    %v376 = vadd.f32 %v312, %v375
    %v377 = vpop.f32.mrb[0].mxu0
    %v378 = vpop.f32.mrb[0].mxu0
    %v379 = vadd.f32 %v312, %v378
    %v380 = vpop.f32.mrb[0].mxu0
    %381 = vdwg.mxu0
    %v382 = vmax.f32 %v376, 0.0
    %v383 = vmax.f32 %v379, 0.0
    %v384 = vpack.c.bf16 %v383, %v382
    %v385 = vld [vmem:[%s7] sm:$0xf]
    %v386 = vld [vmem:[%s7 + $0x4] sm:$0xf]
    %v387 = vld [vmem:[%s7 + $0x8] sm:$0xf]
    %v388 = vld [vmem:[%s7 + $0xc] sm:$0xf]
    %v389 = vld [vmem:[%s7 + $0x10] sm:$0xf]
    %v390 = vld [vmem:[%s7 + $0x14] sm:$0xf]
    %v391 = vld [vmem:[%s7 + $0x18] sm:$0xf]
    %v392 = vld [vmem:[%s7 + $0x1c] sm:$0xf]
    %v393 = vld [vmem:[%s8] sm:$0x1]
    %v395 = vlaneseq
    %v396 = vshrl.u32 %v395, 7
    %v397 = vsub.s32 0, %v396
    %v398 = vrot.slane %v393, %v397
    %v408 = vunpack.c.l.b16 %v385
    %v409 = vunpack.c.l.b16 %v386
    %v410 = vunpack.c.l.b16 %v387
    %v411 = vunpack.c.l.b16 %v388
    %v412 = vunpack.c.l.b16 %v389
    %v413 = vunpack.c.l.b16 %v390
    %v414 = vunpack.c.l.b16 %v391
    %v415 = vunpack.c.l.b16 %v392
    %v416 = vpack.c.b16 %v409, %v408
    %v417 = vpack.c.b16 %v411, %v410
    %v418 = vpack.c.b16 %v413, %v412
    %v419 = vpack.c.b16 %v415, %v414
    %v425 = vsel %vm133, %v384, 0
    %427 = vmatprep.subr.bf16.mxu0 0
    %428 = vmatpush1.bf16.msra.mxu0 %v416
    %429 = vmatprep.subr.bf16.mxu0 0
    %430 = vmatpush1.bf16.msra.mxu0 %v417
    %431 = vmatprep.subr.bf16.mxu0 0
    %432 = vmatpush1.bf16.msra.mxu0 %v418
    %433 = vmatprep.subr.bf16.mxu0 0
    %434 = vmatpush1.bf16.msra.mxu0 %v419
    %435 = vmatprep.subr.bf16.mxu0 0
    %436 = vmatpush1.bf16.msra.mxu0 0
    %437 = vmatprep.subr.bf16.mxu0 0
    %438 = vmatpush1.bf16.msra.mxu0 0
    %439 = vmatprep.subr.bf16.mxu0 0
    %440 = vmatpush1.bf16.msra.mxu0 0
    %441 = vmatprep.subr.bf16.mxu0 0
    %442 = vmatpush1.bf16.msra.mxu0 0
    %443 = vmatprep.subr.bf16.mxu0 0
    %444 = vmatpush1.bf16.msra.mxu0 0
    %445 = vmatprep.subr.bf16.mxu0 0
    %446 = vmatpush1.bf16.msra.mxu0 0
    %447 = vmatprep.subr.bf16.mxu0 0
    %448 = vmatpush1.bf16.msra.mxu0 0
    %449 = vmatprep.subr.bf16.mxu0 0
    %450 = vmatpush1.bf16.msra.mxu0 0
    %451 = vmatprep.subr.bf16.mxu0 0
    %452 = vmatpush1.bf16.msra.mxu0 0
    %453 = vmatprep.subr.bf16.mxu0 0
    %454 = vmatpush1.bf16.msra.mxu0 0
    %455 = vmatprep.subr.bf16.mxu0 0
    %456 = vmatpush1.bf16.msra.mxu0 0
    %457 = vmatprep.subr.bf16.mxu0 0
    %458 = vmatpush1.bf16.msra.mxu0 0
    %459 = vmatprep.mubr.bf16.mxu0 0
    %460 = vmatmul.mubr.bf16.gmra.mrb[0].mxu0 %v425
    %v461 = vpop.f32.mrb[0].mxu0
    %v462 = vadd.f32 %v398, %v461
    %v463 = vpop.f32.mrb[0].mxu0
    %v464 = vpop.f32.mrb[0].mxu0
    %v465 = vadd.f32 %v398, %v464
    %v466 = vpop.f32.mrb[0].mxu0
    %467 = vdwg.mxu0
    %v468 = vadd.f32 %v43, %v462
    %v469 = vadd.f32 %v44, %v465
  $region42: #{raft_bi_forward.7} parent=0 // loop_footer
    %s40 = sadd.s32 1, %s36
  $region43: #{raft_bi_forward.7} parent=0 // loop_footer_branch
    %35 = sbr.rel target = $region39
  $region44: #{raft_bi_forward.7} parent=0 // loop_exit
    _
  %470 = vst [vmem:[%s9] sm:$0xff] %v43
  %471 = vst [vmem:[%s9 + $0x8] sm:$0xff] %v44
  // Predicated region
  $region45: #{raft_bi_forward.7} parent=0 // pred_check
    _
  $region46: #{raft_bi_forward.7} parent=0 // pred_check_branch
    %473 = sbr.rel (0) target = $region48
  $region47: #{raft_bi_forward.7} parent=0 // pred_region
    _
  $region48: #{raft_bi_forward.7} parent=0 // pred_fallthru
    _
  // Predicated region
  $region49: #{raft_bi_forward.7} parent=0 // pred_check
    _
  $region50: #{raft_bi_forward.7} parent=0 // pred_check_branch
    %475 = sbr.rel (0) target = $region52
  $region51: #{raft_bi_forward.7} parent=0 // pred_region
    _
  $region52: #{raft_bi_forward.7} parent=0 // pred_fallthru
    _

</llo_original>
